<compile_context>
chip_gen: v6e
topology: v6e:2x2x1
jax: 0.10.0
libtpu: 0.0.40
codegen_flags: <defaults>
</compile_context>

<pallas_src>
import numpy as np
import jax
import jax.numpy as jnp
from jax import lax
from jax.experimental import pallas as pl
from jax.experimental.pallas import tpu as pltpu


def _path_traversal_kernel(idx_ref, x_ref, o_ref, xT_ref, gT_ref):
    """One (batch, path-block) grid step.

    idx_ref: SMEM (nPath, S) int32  -- flat spatial gather indices per path
    x_ref:   VMEM (C, S)            -- one batch element, native channel-first
    o_ref:   VMEM (ppb, C, S)       -- output slab for this (batch, path-block)
    xT_ref:  VMEM (S, C) scratch    -- channel-last copy of the batch element
    gT_ref:  VMEM (S, C) scratch    -- gathered rows before the final transpose
    """
    ppb, C, S = o_ref.shape
    pb = pl.program_id(1)

    # Transpose the input tile once per batch element.  The path-block axis is
    # the inner, sequential ("arbitrary") grid axis, so the same x tile (and
    # this scratch) stays resident for all path blocks of this batch element.
    @pl.when(pb == 0)
    def _():
        xT_ref[...] = x_ref[...].astype(xT_ref.dtype).T       # (C,S) -> (S,C), XLU

    n_full = S // 8
    tail_start = n_full * 8

    for p in range(ppb):                                       # static, small
        p_glob = pb * ppb + p

        def gather8(t, carry):
            base = pl.multiple_of(t * 8, 8)
            # 8 dynamic row loads, assembled into one full (8, C) block so the
            # scratch store is a dense 8-sublane store (no masked vst per row).
            rows = [
                xT_ref[pl.ds(idx_ref[p_glob, base + r], 1), :]  # (1, C)
                for r in range(8)
            ]
            gT_ref[pl.ds(base, 8), :] = jnp.concatenate(rows, axis=0)
            return carry

        lax.fori_loop(0, n_full, gather8, 0)

        if tail_start < S:                                     # static remainder
            def gather1(s, carry):
                gT_ref[pl.ds(s, 1), :] = xT_ref[pl.ds(idx_ref[p_glob, s], 1), :]
                return carry
            lax.fori_loop(tail_start, S, gather1, 0)

        # Transpose back and emit one lane-dense (C, S) block for this path.
        o_ref[p, :, :] = gT_ref[...].T.astype(o_ref.dtype)


def path_traversal(img, paths, *, vmem_budget_bytes=48 * 1024 * 1024):
    """img: (B, C, H, W); paths: (nPath, H*W, 2) int -> (B, nPath*C, H*W)."""
    B, C, H, W = img.shape
    nPath = paths.shape[0]
    S = H * W
    assert paths.shape == (nPath, S, 2)

    # Fold (h, w) into flat spatial indices once; clamp so a bad path entry can
    # only read a wrong-but-valid pixel (TPU VMEM loads are not bounds-checked).
    flat_idx = (paths[..., 0].astype(jnp.int32) * W
                + paths[..., 1].astype(jnp.int32))              # (nPath, S)
    flat_idx = jnp.clip(flat_idx, 0, S - 1)

    x = img.reshape(B, C, S)                                    # free, no relayout

    # Gather scratch dtype: keep 32-bit rows so dynamic single-row loads/stores
    # never touch packed (bf16/int8) sublane layouts.
    scratch_dtype = img.dtype if jnp.dtype(img.dtype).itemsize == 4 else jnp.float32

    itemsize = jnp.dtype(img.dtype).itemsize
    tile = C * S * itemsize                                     # one (C,S) slab
    scratch_bytes = 2 * C * S * jnp.dtype(scratch_dtype).itemsize
    fixed = 2 * tile + scratch_bytes                            # dbl-buffered input + scratch

    # Fold as many paths as fit into one output block (output is double-buffered).
    ppb = 1
    for cand in range(1, nPath + 1):
        if nPath % cand == 0 and fixed + 2 * cand * tile <= vmem_budget_bytes:
            ppb = cand
    n_pblk = nPath // ppb

    vmem_limit = int(min(100 * 1024 * 1024,
                         max(4 * 1024 * 1024,
                             fixed + 2 * ppb * tile + (2 << 20))))

    out = pl.pallas_call(
        _path_traversal_kernel,
        out_shape=jax.ShapeDtypeStruct((B, nPath, C, S), img.dtype),
        grid=(B, n_pblk),
        in_specs=[
            # small index table lives whole in SMEM (scalar reads in the kernel)
            pl.BlockSpec(memory_space=pltpu.MemorySpace.SMEM),
            # native-layout batch tile; block index constant across path blocks
            pl.BlockSpec((None, C, S), lambda b, pb: (b, 0, 0)),
        ],
        out_specs=pl.BlockSpec((None, ppb, C, S), lambda b, pb: (b, pb, 0, 0)),
        scratch_shapes=[
            pltpu.VMEM((S, C), scratch_dtype),   # xT: channel-last input copy
            pltpu.VMEM((S, C), scratch_dtype),   # gT: gathered rows per path
        ],
        compiler_params=pltpu.CompilerParams(
            # batch axis parallel (megacore); path-block axis must stay
            # sequential so the per-batch input transpose (pb == 0) is valid.
            dimension_semantics=("parallel", "arbitrary"),
            vmem_limit_bytes=vmem_limit,
        ),
    )(flat_idx, x)

    # (B, nPath, C, S) -> (B, nPath*C, S) is a contiguous (free) reshape.
    return out.reshape(B, nPath * C, S)


if __name__ == "__main__":
    # Small but lane-friendly demo shapes: C=128 channels, 16x16 spatial (S=256),
    # 4 paths, batch 2 -> all kernel tiles are (8,128)-aligned and stores are
    # fully lane-dense.
    B, C, H, W, nPath = 2, 128, 16, 16, 4
    S = H * W

    key = jax.random.PRNGKey(0)
    kx, kh, kw = jax.random.split(key, 3)
    img = jax.random.normal(kx, (B, C, H, W), jnp.float32)
    h_idx = jax.random.randint(kh, (nPath, S), 0, H, dtype=jnp.int32)
    w_idx = jax.random.randint(kw, (nPath, S), 0, W, dtype=jnp.int32)
    paths = jnp.stack([h_idx, w_idx], axis=-1)                  # (nPath, S, 2)

    out = jax.block_until_ready(path_traversal(img, paths))
    assert out.shape == (B, nPath * C, S)

    # plain-JAX reference of the CUDA kernel's semantics
    flat_idx = h_idx * W + w_idx                                # (nPath, S)
    flat = img.reshape(B, C, S)
    ref = jnp.take(flat, flat_idx.reshape(-1), axis=2).reshape(B, C, nPath, S)
    ref = jnp.transpose(ref, (0, 2, 1, 3)).reshape(B, nPath * C, S)
    ref = jax.block_until_ready(ref)

    assert np.array_equal(np.asarray(out), np.asarray(ref)), float(
        np.max(np.abs(np.asarray(out) - np.asarray(ref))))

    print("KERNEL_OK")
</pallas_src>

<mosaic_0001>
module attributes {stable_mosaic.version = 11 : i64} {
  func.func @_path_traversal_kernel(%arg0: i32, %arg1: i32, %arg2: memref<4x256xi32, #tpu.memory_space<smem>>, %arg3: memref<1x128x256xf32, #tpu.memory_space<vmem>>, %arg4: memref<1x4x128x256xf32, #tpu.memory_space<vmem>>, %arg5: memref<256x128xf32, #tpu.memory_space<vmem>>, %arg6: memref<256x128xf32, #tpu.memory_space<vmem>>) attributes {dimension_semantics = [#tpu.dimension_semantics<parallel>, #tpu.dimension_semantics<arbitrary>], iteration_bounds = array<i64: 2, 1>, scalar_prefetch = 0 : i64, scratch_operands = 2 : i64, tpu.core_type = #tpu.core_type<tc>, window_params = [{transform_indices = @transform_0, window_bounds = array<i64: 4, 256>}, {transform_indices = @transform_1, window_bounds = array<i64: 1, 128, 256>}, {transform_indices = @transform_2, window_bounds = array<i64: 1, 4, 128, 256>}]} {
    %c0_i32 = arith.constant 0 : i32
    %0 = arith.cmpi eq, %arg1, %c0_i32 : i32
    %1 = arith.extui %0 : i1 to i32
    %c0_i32_0 = arith.constant 0 : i32
    %2 = arith.cmpi ne, %1, %c0_i32_0 : i32
    scf.if %2 {
      %c0_40 = arith.constant 0 : index
      %c0_41 = arith.constant 0 : index
      %c0_42 = arith.constant 0 : index
      %35 = vector.load %arg3[%c0_40, %c0_41, %c0_42] : memref<1x128x256xf32, #tpu.memory_space<vmem>>, vector<1x128x256xf32>
      %36 = vector.shape_cast %35 : vector<1x128x256xf32> to vector<128x256xf32>
      %37 = tpu.transpose %36, [1, 0] : vector<128x256xf32> -> vector<256x128xf32>
      %c0_43 = arith.constant 0 : index
      %c0_44 = arith.constant 0 : index
      %38 = vector.load %arg5[%c0_43, %c0_44] : memref<256x128xf32, #tpu.memory_space<vmem>>, vector<256x128xf32>
      tpu.vector_store %arg5[%c0_43, %c0_44], %37 {strides = array<i32>} : memref<256x128xf32, #tpu.memory_space<vmem>>, vector<256x128xf32>,
    } else {
    }
    %c4_i32 = arith.constant 4 : i32
    %3 = arith.muli %arg1, %c4_i32 : i32
    %c0_i32_1 = arith.constant 0 : i32
    %4 = arith.addi %3, %c0_i32_1 : i32
    %c0_i32_2 = arith.constant 0 : i32
    %c32_i32 = arith.constant 32 : i32
    %5 = arith.addi %c0_i32_2, %c32_i32 : i32
    %c1_i32 = arith.constant 1 : i32
    scf.for %arg7 = %c0_i32_2 to %5 step %c1_i32  : i32 {
      %c8_i32 = arith.constant 8 : i32
      %35 = arith.muli %arg7, %c8_i32 : i32
      %36 = tpu.assume_multiple %35, 8 : i32
      %c0_i32_40 = arith.constant 0 : i32
      %37 = arith.addi %36, %c0_i32_40 : i32
      %38 = arith.index_cast %4 : i32 to index
      %39 = arith.index_cast %37 : i32 to index
      %40 = memref.load %arg2[%38, %39] : memref<4x256xi32, #tpu.memory_space<smem>>
      %41 = arith.index_cast %40 : i32 to index
      %c0_41 = arith.constant 0 : index
      %42 = vector.load %arg5[%41, %c0_41] : memref<256x128xf32, #tpu.memory_space<vmem>>, vector<1x128xf32>
      %c1_i32_42 = arith.constant 1 : i32
      %43 = arith.addi %36, %c1_i32_42 : i32
      %44 = arith.index_cast %4 : i32 to index
      %45 = arith.index_cast %43 : i32 to index
      %46 = memref.load %arg2[%44, %45] : memref<4x256xi32, #tpu.memory_space<smem>>
      %47 = arith.index_cast %46 : i32 to index
      %c0_43 = arith.constant 0 : index
      %48 = vector.load %arg5[%47, %c0_43] : memref<256x128xf32, #tpu.memory_space<vmem>>, vector<1x128xf32>
      %c2_i32_44 = arith.constant 2 : i32
      %49 = arith.addi %36, %c2_i32_44 : i32
      %50 = arith.index_cast %4 : i32 to index
      %51 = arith.index_cast %49 : i32 to index
      %52 = memref.load %arg2[%50, %51] : memref<4x256xi32, #tpu.memory_space<smem>>
      %53 = arith.index_cast %52 : i32 to index
      %c0_45 = arith.constant 0 : index
      %54 = vector.load %arg5[%53, %c0_45] : memref<256x128xf32, #tpu.memory_space<vmem>>, vector<1x128xf32>
      %c3_i32_46 = arith.constant 3 : i32
      %55 = arith.addi %36, %c3_i32_46 : i32
      %56 = arith.index_cast %4 : i32 to index
      %57 = arith.index_cast %55 : i32 to index
      %58 = memref.load %arg2[%56, %57] : memref<4x256xi32, #tpu.memory_space<smem>>
      %59 = arith.index_cast %58 : i32 to index
      %c0_47 = arith.constant 0 : index
      %60 = vector.load %arg5[%59, %c0_47] : memref<256x128xf32, #tpu.memory_space<vmem>>, vector<1x128xf32>
      %c4_i32_48 = arith.constant 4 : i32
      %61 = arith.addi %36, %c4_i32_48 : i32
      %62 = arith.index_cast %4 : i32 to index
      %63 = arith.index_cast %61 : i32 to index
      %64 = memref.load %arg2[%62, %63] : memref<4x256xi32, #tpu.memory_space<smem>>
      %65 = arith.index_cast %64 : i32 to index
      %c0_49 = arith.constant 0 : index
      %66 = vector.load %arg5[%65, %c0_49] : memref<256x128xf32, #tpu.memory_space<vmem>>, vector<1x128xf32>
      %c5_i32 = arith.constant 5 : i32
      %67 = arith.addi %36, %c5_i32 : i32
      %68 = arith.index_cast %4 : i32 to index
      %69 = arith.index_cast %67 : i32 to index
      %70 = memref.load %arg2[%68, %69] : memref<4x256xi32, #tpu.memory_space<smem>>
      %71 = arith.index_cast %70 : i32 to index
      %c0_50 = arith.constant 0 : index
      %72 = vector.load %arg5[%71, %c0_50] : memref<256x128xf32, #tpu.memory_space<vmem>>, vector<1x128xf32>
      %c6_i32 = arith.constant 6 : i32
      %73 = arith.addi %36, %c6_i32 : i32
      %74 = arith.index_cast %4 : i32 to index
      %75 = arith.index_cast %73 : i32 to index
      %76 = memref.load %arg2[%74, %75] : memref<4x256xi32, #tpu.memory_space<smem>>
      %77 = arith.index_cast %76 : i32 to index
      %c0_51 = arith.constant 0 : index
      %78 = vector.load %arg5[%77, %c0_51] : memref<256x128xf32, #tpu.memory_space<vmem>>, vector<1x128xf32>
      %c7_i32 = arith.constant 7 : i32
      %79 = arith.addi %36, %c7_i32 : i32
      %80 = arith.index_cast %4 : i32 to index
      %81 = arith.index_cast %79 : i32 to index
      %82 = memref.load %arg2[%80, %81] : memref<4x256xi32, #tpu.memory_space<smem>>
      %83 = arith.index_cast %82 : i32 to index
      %c0_52 = arith.constant 0 : index
      %84 = vector.load %arg5[%83, %c0_52] : memref<256x128xf32, #tpu.memory_space<vmem>>, vector<1x128xf32>
      %85 = tpu.concatenate %42, %48, %54, %60, %66, %72, %78, %84 in 0 : vector<1x128xf32>, vector<1x128xf32>, vector<1x128xf32>, vector<1x128xf32>, vector<1x128xf32>, vector<1x128xf32>, vector<1x128xf32>, vector<1x128xf32> -> vector<8x128xf32>
      %86 = arith.index_cast %36 : i32 to index
      %c0_53 = arith.constant 0 : index
      %87 = vector.load %arg6[%86, %c0_53] : memref<256x128xf32, #tpu.memory_space<vmem>>, vector<8x128xf32>
      tpu.vector_store %arg6[%86, %c0_53], %85 {strides = array<i32>} : memref<256x128xf32, #tpu.memory_space<vmem>>, vector<8x128xf32>,
    }
    %c32_i32_3 = arith.constant 32 : i32
    %c0 = arith.constant 0 : index
    %c0_4 = arith.constant 0 : index
    %6 = vector.load %arg6[%c0, %c0_4] : memref<256x128xf32, #tpu.memory_space<vmem>>, vector<256x128xf32>
    %7 = tpu.transpose %6, [1, 0] : vector<256x128xf32> -> vector<128x256xf32>
    %c0_5 = arith.constant 0 : index
    %c0_6 = arith.constant 0 : index
    %c0_7 = arith.constant 0 : index
    %c0_8 = arith.constant 0 : index
    %8 = vector.load %arg4[%c0_5, %c0_6, %c0_7, %c0_8] : memref<1x4x128x256xf32, #tpu.memory_space<vmem>>, vector<1x1x128x256xf32>
    %9 = vector.shape_cast %8 : vector<1x1x128x256xf32> to vector<128x256xf32>
    %10 = vector.shape_cast %7 : vector<128x256xf32> to vector<1x1x128x256xf32>
    tpu.vector_store %arg4[%c0_5, %c0_6, %c0_7, %c0_8], %10 {strides = array<i32>} : memref<1x4x128x256xf32, #tpu.memory_space<vmem>>, vector<1x1x128x256xf32>,
    %c4_i32_9 = arith.constant 4 : i32
    %11 = arith.muli %arg1, %c4_i32_9 : i32
    %c1_i32_10 = arith.constant 1 : i32
    %12 = arith.addi %11, %c1_i32_10 : i32
    %c0_i32_11 = arith.constant 0 : i32
    %c32_i32_12 = arith.constant 32 : i32
    %13 = arith.addi %c0_i32_11, %c32_i32_12 : i32
    %c1_i32_13 = arith.constant 1 : i32
    scf.for %arg7 = %c0_i32_11 to %13 step %c1_i32_13  : i32 {
      %c8_i32 = arith.constant 8 : i32
      %35 = arith.muli %arg7, %c8_i32 : i32
      %36 = tpu.assume_multiple %35, 8 : i32
      %c0_i32_40 = arith.constant 0 : i32
      %37 = arith.addi %36, %c0_i32_40 : i32
      %38 = arith.index_cast %12 : i32 to index
      %39 = arith.index_cast %37 : i32 to index
      %40 = memref.load %arg2[%38, %39] : memref<4x256xi32, #tpu.memory_space<smem>>
      %41 = arith.index_cast %40 : i32 to index
      %c0_41 = arith.constant 0 : index
      %42 = vector.load %arg5[%41, %c0_41] : memref<256x128xf32, #tpu.memory_space<vmem>>, vector<1x128xf32>
      %c1_i32_42 = arith.constant 1 : i32
      %43 = arith.addi %36, %c1_i32_42 : i32
      %44 = arith.index_cast %12 : i32 to index
      %45 = arith.index_cast %43 : i32 to index
      %46 = memref.load %arg2[%44, %45] : memref<4x256xi32, #tpu.memory_space<smem>>
      %47 = arith.index_cast %46 : i32 to index
      %c0_43 = arith.constant 0 : index
      %48 = vector.load %arg5[%47, %c0_43] : memref<256x128xf32, #tpu.memory_space<vmem>>, vector<1x128xf32>
      %c2_i32_44 = arith.constant 2 : i32
      %49 = arith.addi %36, %c2_i32_44 : i32
      %50 = arith.index_cast %12 : i32 to index
      %51 = arith.index_cast %49 : i32 to index
      %52 = memref.load %arg2[%50, %51] : memref<4x256xi32, #tpu.memory_space<smem>>
      %53 = arith.index_cast %52 : i32 to index
      %c0_45 = arith.constant 0 : index
      %54 = vector.load %arg5[%53, %c0_45] : memref<256x128xf32, #tpu.memory_space<vmem>>, vector<1x128xf32>
      %c3_i32_46 = arith.constant 3 : i32
      %55 = arith.addi %36, %c3_i32_46 : i32
      %56 = arith.index_cast %12 : i32 to index
      %57 = arith.index_cast %55 : i32 to index
      %58 = memref.load %arg2[%56, %57] : memref<4x256xi32, #tpu.memory_space<smem>>
      %59 = arith.index_cast %58 : i32 to index
      %c0_47 = arith.constant 0 : index
      %60 = vector.load %arg5[%59, %c0_47] : memref<256x128xf32, #tpu.memory_space<vmem>>, vector<1x128xf32>
      %c4_i32_48 = arith.constant 4 : i32
      %61 = arith.addi %36, %c4_i32_48 : i32
      %62 = arith.index_cast %12 : i32 to index
      %63 = arith.index_cast %61 : i32 to index
      %64 = memref.load %arg2[%62, %63] : memref<4x256xi32, #tpu.memory_space<smem>>
      %65 = arith.index_cast %64 : i32 to index
      %c0_49 = arith.constant 0 : index
      %66 = vector.load %arg5[%65, %c0_49] : memref<256x128xf32, #tpu.memory_space<vmem>>, vector<1x128xf32>
      %c5_i32 = arith.constant 5 : i32
      %67 = arith.addi %36, %c5_i32 : i32
      %68 = arith.index_cast %12 : i32 to index
      %69 = arith.index_cast %67 : i32 to index
      %70 = memref.load %arg2[%68, %69] : memref<4x256xi32, #tpu.memory_space<smem>>
      %71 = arith.index_cast %70 : i32 to index
      %c0_50 = arith.constant 0 : index
      %72 = vector.load %arg5[%71, %c0_50] : memref<256x128xf32, #tpu.memory_space<vmem>>, vector<1x128xf32>
      %c6_i32 = arith.constant 6 : i32
      %73 = arith.addi %36, %c6_i32 : i32
      %74 = arith.index_cast %12 : i32 to index
      %75 = arith.index_cast %73 : i32 to index
      %76 = memref.load %arg2[%74, %75] : memref<4x256xi32, #tpu.memory_space<smem>>
      %77 = arith.index_cast %76 : i32 to index
      %c0_51 = arith.constant 0 : index
      %78 = vector.load %arg5[%77, %c0_51] : memref<256x128xf32, #tpu.memory_space<vmem>>, vector<1x128xf32>
      %c7_i32 = arith.constant 7 : i32
      %79 = arith.addi %36, %c7_i32 : i32
      %80 = arith.index_cast %12 : i32 to index
      %81 = arith.index_cast %79 : i32 to index
      %82 = memref.load %arg2[%80, %81] : memref<4x256xi32, #tpu.memory_space<smem>>
      %83 = arith.index_cast %82 : i32 to index
      %c0_52 = arith.constant 0 : index
      %84 = vector.load %arg5[%83, %c0_52] : memref<256x128xf32, #tpu.memory_space<vmem>>, vector<1x128xf32>
      %85 = tpu.concatenate %42, %48, %54, %60, %66, %72, %78, %84 in 0 : vector<1x128xf32>, vector<1x128xf32>, vector<1x128xf32>, vector<1x128xf32>, vector<1x128xf32>, vector<1x128xf32>, vector<1x128xf32>, vector<1x128xf32> -> vector<8x128xf32>
      %86 = arith.index_cast %36 : i32 to index
      %c0_53 = arith.constant 0 : index
      %87 = vector.load %arg6[%86, %c0_53] : memref<256x128xf32, #tpu.memory_space<vmem>>, vector<8x128xf32>
      tpu.vector_store %arg6[%86, %c0_53], %85 {strides = array<i32>} : memref<256x128xf32, #tpu.memory_space<vmem>>, vector<8x128xf32>,
    }
    %c32_i32_14 = arith.constant 32 : i32
    %c0_15 = arith.constant 0 : index
    %c0_16 = arith.constant 0 : index
    %14 = vector.load %arg6[%c0_15, %c0_16] : memref<256x128xf32, #tpu.memory_space<vmem>>, vector<256x128xf32>
    %15 = tpu.transpose %14, [1, 0] : vector<256x128xf32> -> vector<128x256xf32>
    %c0_17 = arith.constant 0 : index
    %c1 = arith.constant 1 : index
    %c0_18 = arith.constant 0 : index
    %c0_19 = arith.constant 0 : index
    %16 = vector.load %arg4[%c0_17, %c1, %c0_18, %c0_19] : memref<1x4x128x256xf32, #tpu.memory_space<vmem>>, vector<1x1x128x256xf32>
    %17 = vector.shape_cast %16 : vector<1x1x128x256xf32> to vector<128x256xf32>
    %18 = vector.shape_cast %15 : vector<128x256xf32> to vector<1x1x128x256xf32>
    tpu.vector_store %arg4[%c0_17, %c1, %c0_18, %c0_19], %18 {strides = array<i32>} : memref<1x4x128x256xf32, #tpu.memory_space<vmem>>, vector<1x1x128x256xf32>,
    %c4_i32_20 = arith.constant 4 : i32
    %19 = arith.muli %arg1, %c4_i32_20 : i32
    %c2_i32 = arith.constant 2 : i32
    %20 = arith.addi %19, %c2_i32 : i32
    %c0_i32_21 = arith.constant 0 : i32
    %c32_i32_22 = arith.constant 32 : i32
    %21 = arith.addi %c0_i32_21, %c32_i32_22 : i32
    %c1_i32_23 = arith.constant 1 : i32
    scf.for %arg7 = %c0_i32_21 to %21 step %c1_i32_23  : i32 {
      %c8_i32 = arith.constant 8 : i32
      %35 = arith.muli %arg7, %c8_i32 : i32
      %36 = tpu.assume_multiple %35, 8 : i32
      %c0_i32_40 = arith.constant 0 : i32
      %37 = arith.addi %36, %c0_i32_40 : i32
      %38 = arith.index_cast %20 : i32 to index
      %39 = arith.index_cast %37 : i32 to index
      %40 = memref.load %arg2[%38, %39] : memref<4x256xi32, #tpu.memory_space<smem>>
      %41 = arith.index_cast %40 : i32 to index
      %c0_41 = arith.constant 0 : index
      %42 = vector.load %arg5[%41, %c0_41] : memref<256x128xf32, #tpu.memory_space<vmem>>, vector<1x128xf32>
      %c1_i32_42 = arith.constant 1 : i32
      %43 = arith.addi %36, %c1_i32_42 : i32
      %44 = arith.index_cast %20 : i32 to index
      %45 = arith.index_cast %43 : i32 to index
      %46 = memref.load %arg2[%44, %45] : memref<4x256xi32, #tpu.memory_space<smem>>
      %47 = arith.index_cast %46 : i32 to index
      %c0_43 = arith.constant 0 : index
      %48 = vector.load %arg5[%47, %c0_43] : memref<256x128xf32, #tpu.memory_space<vmem>>, vector<1x128xf32>
      %c2_i32_44 = arith.constant 2 : i32
      %49 = arith.addi %36, %c2_i32_44 : i32
      %50 = arith.index_cast %20 : i32 to index
      %51 = arith.index_cast %49 : i32 to index
      %52 = memref.load %arg2[%50, %51] : memref<4x256xi32, #tpu.memory_space<smem>>
      %53 = arith.index_cast %52 : i32 to index
      %c0_45 = arith.constant 0 : index
      %54 = vector.load %arg5[%53, %c0_45] : memref<256x128xf32, #tpu.memory_space<vmem>>, vector<1x128xf32>
      %c3_i32_46 = arith.constant 3 : i32
      %55 = arith.addi %36, %c3_i32_46 : i32
      %56 = arith.index_cast %20 : i32 to index
      %57 = arith.index_cast %55 : i32 to index
      %58 = memref.load %arg2[%56, %57] : memref<4x256xi32, #tpu.memory_space<smem>>
      %59 = arith.index_cast %58 : i32 to index
      %c0_47 = arith.constant 0 : index
      %60 = vector.load %arg5[%59, %c0_47] : memref<256x128xf32, #tpu.memory_space<vmem>>, vector<1x128xf32>
      %c4_i32_48 = arith.constant 4 : i32
      %61 = arith.addi %36, %c4_i32_48 : i32
      %62 = arith.index_cast %20 : i32 to index
      %63 = arith.index_cast %61 : i32 to index
      %64 = memref.load %arg2[%62, %63] : memref<4x256xi32, #tpu.memory_space<smem>>
      %65 = arith.index_cast %64 : i32 to index
      %c0_49 = arith.constant 0 : index
      %66 = vector.load %arg5[%65, %c0_49] : memref<256x128xf32, #tpu.memory_space<vmem>>, vector<1x128xf32>
      %c5_i32 = arith.constant 5 : i32
      %67 = arith.addi %36, %c5_i32 : i32
      %68 = arith.index_cast %20 : i32 to index
      %69 = arith.index_cast %67 : i32 to index
      %70 = memref.load %arg2[%68, %69] : memref<4x256xi32, #tpu.memory_space<smem>>
      %71 = arith.index_cast %70 : i32 to index
      %c0_50 = arith.constant 0 : index
      %72 = vector.load %arg5[%71, %c0_50] : memref<256x128xf32, #tpu.memory_space<vmem>>, vector<1x128xf32>
      %c6_i32 = arith.constant 6 : i32
      %73 = arith.addi %36, %c6_i32 : i32
      %74 = arith.index_cast %20 : i32 to index
      %75 = arith.index_cast %73 : i32 to index
      %76 = memref.load %arg2[%74, %75] : memref<4x256xi32, #tpu.memory_space<smem>>
      %77 = arith.index_cast %76 : i32 to index
      %c0_51 = arith.constant 0 : index
      %78 = vector.load %arg5[%77, %c0_51] : memref<256x128xf32, #tpu.memory_space<vmem>>, vector<1x128xf32>
      %c7_i32 = arith.constant 7 : i32
      %79 = arith.addi %36, %c7_i32 : i32
      %80 = arith.index_cast %20 : i32 to index
      %81 = arith.index_cast %79 : i32 to index
      %82 = memref.load %arg2[%80, %81] : memref<4x256xi32, #tpu.memory_space<smem>>
      %83 = arith.index_cast %82 : i32 to index
      %c0_52 = arith.constant 0 : index
      %84 = vector.load %arg5[%83, %c0_52] : memref<256x128xf32, #tpu.memory_space<vmem>>, vector<1x128xf32>
      %85 = tpu.concatenate %42, %48, %54, %60, %66, %72, %78, %84 in 0 : vector<1x128xf32>, vector<1x128xf32>, vector<1x128xf32>, vector<1x128xf32>, vector<1x128xf32>, vector<1x128xf32>, vector<1x128xf32>, vector<1x128xf32> -> vector<8x128xf32>
      %86 = arith.index_cast %36 : i32 to index
      %c0_53 = arith.constant 0 : index
      %87 = vector.load %arg6[%86, %c0_53] : memref<256x128xf32, #tpu.memory_space<vmem>>, vector<8x128xf32>
      tpu.vector_store %arg6[%86, %c0_53], %85 {strides = array<i32>} : memref<256x128xf32, #tpu.memory_space<vmem>>, vector<8x128xf32>,
    }
    %c32_i32_24 = arith.constant 32 : i32
    %c0_25 = arith.constant 0 : index
    %c0_26 = arith.constant 0 : index
    %22 = vector.load %arg6[%c0_25, %c0_26] : memref<256x128xf32, #tpu.memory_space<vmem>>, vector<256x128xf32>
    %23 = tpu.transpose %22, [1, 0] : vector<256x128xf32> -> vector<128x256xf32>
    %c0_27 = arith.constant 0 : index
    %c2 = arith.constant 2 : index
    %c0_28 = arith.constant 0 : index
    %c0_29 = arith.constant 0 : index
    %24 = vector.load %arg4[%c0_27, %c2, %c0_28, %c0_29] : memref<1x4x128x256xf32, #tpu.memory_space<vmem>>, vector<1x1x128x256xf32>
    %25 = vector.shape_cast %24 : vector<1x1x128x256xf32> to vector<128x256xf32>
    %26 = vector.shape_cast %23 : vector<128x256xf32> to vector<1x1x128x256xf32>
    tpu.vector_store %arg4[%c0_27, %c2, %c0_28, %c0_29], %26 {strides = array<i32>} : memref<1x4x128x256xf32, #tpu.memory_space<vmem>>, vector<1x1x128x256xf32>,
    %c4_i32_30 = arith.constant 4 : i32
    %27 = arith.muli %arg1, %c4_i32_30 : i32
    %c3_i32 = arith.constant 3 : i32
    %28 = arith.addi %27, %c3_i32 : i32
    %c0_i32_31 = arith.constant 0 : i32
    %c32_i32_32 = arith.constant 32 : i32
    %29 = arith.addi %c0_i32_31, %c32_i32_32 : i32
    %c1_i32_33 = arith.constant 1 : i32
    scf.for %arg7 = %c0_i32_31 to %29 step %c1_i32_33  : i32 {
      %c8_i32 = arith.constant 8 : i32
      %35 = arith.muli %arg7, %c8_i32 : i32
      %36 = tpu.assume_multiple %35, 8 : i32
      %c0_i32_40 = arith.constant 0 : i32
      %37 = arith.addi %36, %c0_i32_40 : i32
      %38 = arith.index_cast %28 : i32 to index
      %39 = arith.index_cast %37 : i32 to index
      %40 = memref.load %arg2[%38, %39] : memref<4x256xi32, #tpu.memory_space<smem>>
      %41 = arith.index_cast %40 : i32 to index
      %c0_41 = arith.constant 0 : index
      %42 = vector.load %arg5[%41, %c0_41] : memref<256x128xf32, #tpu.memory_space<vmem>>, vector<1x128xf32>
      %c1_i32_42 = arith.constant 1 : i32
      %43 = arith.addi %36, %c1_i32_42 : i32
      %44 = arith.index_cast %28 : i32 to index
      %45 = arith.index_cast %43 : i32 to index
      %46 = memref.load %arg2[%44, %45] : memref<4x256xi32, #tpu.memory_space<smem>>
      %47 = arith.index_cast %46 : i32 to index
      %c0_43 = arith.constant 0 : index
      %48 = vector.load %arg5[%47, %c0_43] : memref<256x128xf32, #tpu.memory_space<vmem>>, vector<1x128xf32>
      %c2_i32_44 = arith.constant 2 : i32
      %49 = arith.addi %36, %c2_i32_44 : i32
      %50 = arith.index_cast %28 : i32 to index
      %51 = arith.index_cast %49 : i32 to index
      %52 = memref.load %arg2[%50, %51] : memref<4x256xi32, #tpu.memory_space<smem>>
      %53 = arith.index_cast %52 : i32 to index
      %c0_45 = arith.constant 0 : index
      %54 = vector.load %arg5[%53, %c0_45] : memref<256x128xf32, #tpu.memory_space<vmem>>, vector<1x128xf32>
      %c3_i32_46 = arith.constant 3 : i32
      %55 = arith.addi %36, %c3_i32_46 : i32
      %56 = arith.index_cast %28 : i32 to index
      %57 = arith.index_cast %55 : i32 to index
      %58 = memref.load %arg2[%56, %57] : memref<4x256xi32, #tpu.memory_space<smem>>
      %59 = arith.index_cast %58 : i32 to index
      %c0_47 = arith.constant 0 : index
      %60 = vector.load %arg5[%59, %c0_47] : memref<256x128xf32, #tpu.memory_space<vmem>>, vector<1x128xf32>
      %c4_i32_48 = arith.constant 4 : i32
      %61 = arith.addi %36, %c4_i32_48 : i32
      %62 = arith.index_cast %28 : i32 to index
      %63 = arith.index_cast %61 : i32 to index
      %64 = memref.load %arg2[%62, %63] : memref<4x256xi32, #tpu.memory_space<smem>>
      %65 = arith.index_cast %64 : i32 to index
      %c0_49 = arith.constant 0 : index
      %66 = vector.load %arg5[%65, %c0_49] : memref<256x128xf32, #tpu.memory_space<vmem>>, vector<1x128xf32>
      %c5_i32 = arith.constant 5 : i32
      %67 = arith.addi %36, %c5_i32 : i32
      %68 = arith.index_cast %28 : i32 to index
      %69 = arith.index_cast %67 : i32 to index
      %70 = memref.load %arg2[%68, %69] : memref<4x256xi32, #tpu.memory_space<smem>>
      %71 = arith.index_cast %70 : i32 to index
      %c0_50 = arith.constant 0 : index
      %72 = vector.load %arg5[%71, %c0_50] : memref<256x128xf32, #tpu.memory_space<vmem>>, vector<1x128xf32>
      %c6_i32 = arith.constant 6 : i32
      %73 = arith.addi %36, %c6_i32 : i32
      %74 = arith.index_cast %28 : i32 to index
      %75 = arith.index_cast %73 : i32 to index
      %76 = memref.load %arg2[%74, %75] : memref<4x256xi32, #tpu.memory_space<smem>>
      %77 = arith.index_cast %76 : i32 to index
      %c0_51 = arith.constant 0 : index
      %78 = vector.load %arg5[%77, %c0_51] : memref<256x128xf32, #tpu.memory_space<vmem>>, vector<1x128xf32>
      %c7_i32 = arith.constant 7 : i32
      %79 = arith.addi %36, %c7_i32 : i32
      %80 = arith.index_cast %28 : i32 to index
      %81 = arith.index_cast %79 : i32 to index
      %82 = memref.load %arg2[%80, %81] : memref<4x256xi32, #tpu.memory_space<smem>>
      %83 = arith.index_cast %82 : i32 to index
      %c0_52 = arith.constant 0 : index
      %84 = vector.load %arg5[%83, %c0_52] : memref<256x128xf32, #tpu.memory_space<vmem>>, vector<1x128xf32>
      %85 = tpu.concatenate %42, %48, %54, %60, %66, %72, %78, %84 in 0 : vector<1x128xf32>, vector<1x128xf32>, vector<1x128xf32>, vector<1x128xf32>, vector<1x128xf32>, vector<1x128xf32>, vector<1x128xf32>, vector<1x128xf32> -> vector<8x128xf32>
      %86 = arith.index_cast %36 : i32 to index
      %c0_53 = arith.constant 0 : index
      %87 = vector.load %arg6[%86, %c0_53] : memref<256x128xf32, #tpu.memory_space<vmem>>, vector<8x128xf32>
      tpu.vector_store %arg6[%86, %c0_53], %85 {strides = array<i32>} : memref<256x128xf32, #tpu.memory_space<vmem>>, vector<8x128xf32>,
    }
    %c32_i32_34 = arith.constant 32 : i32
    %c0_35 = arith.constant 0 : index
    %c0_36 = arith.constant 0 : index
    %30 = vector.load %arg6[%c0_35, %c0_36] : memref<256x128xf32, #tpu.memory_space<vmem>>, vector<256x128xf32>
    %31 = tpu.transpose %30, [1, 0] : vector<256x128xf32> -> vector<128x256xf32>
    %c0_37 = arith.constant 0 : index
    %c3 = arith.constant 3 : index
    %c0_38 = arith.constant 0 : index
    %c0_39 = arith.constant 0 : index
    %32 = vector.load %arg4[%c0_37, %c3, %c0_38, %c0_39] : memref<1x4x128x256xf32, #tpu.memory_space<vmem>>, vector<1x1x128x256xf32>
    %33 = vector.shape_cast %32 : vector<1x1x128x256xf32> to vector<128x256xf32>
    %34 = vector.shape_cast %31 : vector<128x256xf32> to vector<1x1x128x256xf32>
    tpu.vector_store %arg4[%c0_37, %c3, %c0_38, %c0_39], %34 {strides = array<i32>} : memref<1x4x128x256xf32, #tpu.memory_space<vmem>>, vector<1x1x128x256xf32>,
    return
  }
  func.func @transform_0(%arg0: i32, %arg1: i32) -> (i32, i32) {
    %c0_i32 = arith.constant 0 : i32
    %c0_i32_0 = arith.constant 0 : i32
    %c0_i32_1 = arith.constant 0 : i32
    return %c0_i32, %c0_i32_0 : i32, i32
  }
  func.func @transform_1(%arg0: i32, %arg1: i32) -> (i32, i32, i32) {
    %c0_i32 = arith.constant 0 : i32
    %c0_i32_0 = arith.constant 0 : i32
    %c0_i32_1 = arith.constant 0 : i32
    return %arg0, %c0_i32, %c0_i32_0 : i32, i32, i32
  }
  func.func @transform_2(%arg0: i32, %arg1: i32) -> (i32, i32, i32, i32) {
    %c0_i32 = arith.constant 0 : i32
    %c0_i32_0 = arith.constant 0 : i32
    %c0_i32_1 = arith.constant 0 : i32
    return %arg0, %arg1, %c0_i32, %c0_i32_0 : i32, i32, i32, i32
  }
}

</mosaic_0001>

<llo_original>
// kernel: tpu_custom_call.1
$region0: #{tpu_custom_call.1}
  #allocation0 [shape = 'u32[]', space=smem, size = 0x4, offset = 0x4, fixed_abs, tag = 'smem constant byte address 0x4 - core index']
  #allocation1 [shape = 'u32[144,128]{1,0:T(1,128)}', space=vmem, size = 0x12000, scoped, tag = 'internal scratch']
  #allocation2 [shape = 'f32[256,128]{1,0:T(8,128)}', space=vmem, size = 0x20000, scoped, tag = 'scratch operand']
  #allocation3 [shape = 'f32[256,128]{1,0:T(8,128)}', space=vmem, size = 0x20000, scoped, tag = 'scratch operand']
  %s0 = inlined_call_operand.hbm [shape: s32[4,256], index: 0, kind: input, shape index: {}]
  %s1 = inlined_call_operand.hbm [shape: f32[2,128,256], index: 1, kind: input, shape index: {}]
  %s2 = inlined_call_operand.hbm [shape: f32[2,4,128,256], index: 2, kind: output, shape index: {}]
  %s3 = sld [smem:[#allocation0]]
  $region81: #{tpu_custom_call.1} parent=0
    _
  %s5 = ssub.s32 1, %s3
  %s6 = scalar_select 0, %s5, %s3
  $region1: #{tpu_custom_call.1} parent=0
    #allocation4 [shape = 'u8[4096]{0}', space=smem, size = 0x1000, scoped, tag = 'input window, operand 0, single buffered']
    #allocation5 [shape = 's32[2]{0}', space=sflag, size = 0x8, scoped, tag = 'scoped memory for tpu_custom_call.1']
    #allocation6 [shape = 's32[2]{0}', space=sflag, size = 0x8, scoped, tag = 'scoped memory for tpu_custom_call.1']
    #allocation7 [shape = 's32[2]{0}', space=sflag, size = 0x8, scoped, tag = 'scoped memory for tpu_custom_call.1']
    #allocation8 [shape = 'u8[262144]{0}', space=vmem, size = 0x40000, scoped, tag = 'input window, operand 1']
    #allocation9 [shape = 'u8[1048576]{0}', space=vmem, size = 0x100000, scoped, tag = 'output window, operand 0']
    %7 = vsyncpa [#allocation7], 0
    %8 = vsyncpa [#allocation5], 0
    %s9 = scalar_lea.sflag [#allocation5], 1
    %10 = vsyncpa %s9, 0
    %11 = vsyncpa [#allocation6], 0
    %s12 = scalar_lea.sflag [#allocation6], 1
    %13 = vsyncpa %s12, 0
    loop: start=0, step=1, limit=4
    $region2: #{tpu_custom_call.1} parent=1 // loop_pre_header
      _
    $region3: #{tpu_custom_call.1} parent=1 // loop_header
      %s15 = sphi 0, %s19
      %p16 = scmp.ge.s32.totalorder %s15, 4
      %s22 = sphi 0, %s34
      %s23 = sphi 0, %s30
      %s24 = sphi 0, %s22
      %s25 = sphi 0, %s23
      %s26 = sphi 0, %s24
      %s27 = sphi 0, %s25
      %s35 = sphi 0, %s35
      %s37 = sphi 0, %s35
      %s38 = sphi 0, %s37
      %s52 = sphi 0, %s38
      %s58 = sphi 0, %s60
      %s61 = sphi 0, %s58
      %s62 = sphi 0, %s61
      %s78 = sphi 0, %s62
      %s86 = sphi 0, %s88
      %s89 = sphi 0, %s86
      %s90 = sphi 0, %s89
      %s106 = sphi 0, %s90
    $region4: #{tpu_custom_call.1} parent=1 // loop_header_branch
      %18 = sbr.rel (%p16) target = $region8
    $region5: #{tpu_custom_call.1} parent=1 // loop_body
      %s20 = ssub.s32 %s15, 1
      %s21 = ssub.s32 %s15, 2
      %s28 = sadd.s32 1, %s23
      %p29 = scmp.ge.s32.totalorder %s28, 1
      %s30 = scalar_select %p29, 0, %s28
      %s31 = sadd.s32 1, %s22
      %s32 = scalar_select %p29, %s31, %s22
      %p33 = scmp.ge.s32.totalorder %s32, 2
      %s34 = scalar_select %p33, 0, %s32
      %s36 = sadd.s32 %s35, 1
      %p39 = scmp.eq.s32.totalorder %s15, 1
      %p40 = scmp.ne.s32.totalorder %s35, %s37
      %p41 = scmp.eq.s32.totalorder %s15, 0
      %p42 = por %p40, %p41
      %p43 = scmp.ne.s32.totalorder %s35, %s37
      %p44 = scmp.eq.s32.totalorder %s20, 1
      %p45 = por %p43, %p44
      %p46 = scmp.ne.s32.totalorder %s37, %s38
      %p47 = scmp.eq.s32.totalorder %s20, 0
      %p48 = por %p46, %p47
      %p49 = scmp.ne.s32.totalorder %s37, %s38
      %p50 = scmp.eq.s32.totalorder %s21, 1
      %p51 = por %p49, %p50
      %p53 = scmp.ne.s32.totalorder %s38, %s52
      %p54 = scmp.eq.s32.totalorder %s21, 0
      %p55 = por %p53, %p54
      %s56 = ssub.s32 %s22, %s34
      %p57 = scmp.eq.s32.totalorder %s56, 0
      %s59 = sadd.s32 %s58, 1
      %s60 = scalar_select %p57, %s58, %s59
      %p63 = pneg %p57
      %p64 = scmp.eq.s32.totalorder %s15, 1
      %p65 = por %p63, %p64
      %p66 = scmp.ne.s32.totalorder %s58, %s61
      %p67 = scmp.eq.s32.totalorder %s15, 0
      %p68 = por %p66, %p67
      %p69 = scmp.ne.s32.totalorder %s58, %s61
      %p70 = scmp.eq.s32.totalorder %s20, 1
      %p71 = por %p69, %p70
      %p72 = scmp.ne.s32.totalorder %s61, %s62
      %p73 = scmp.eq.s32.totalorder %s20, 0
      %p74 = por %p72, %p73
      %p75 = scmp.ne.s32.totalorder %s61, %s62
      %p76 = scmp.eq.s32.totalorder %s21, 1
      %p77 = por %p75, %p76
      %p79 = scmp.ne.s32.totalorder %s62, %s78
      %p80 = scmp.eq.s32.totalorder %s21, 0
      %p81 = por %p79, %p80
      %s82 = ssub.s32 %s22, %s34
      %s83 = ssub.s32 %s23, %s30
      %s84 = sor.u32 %s82, %s83
      %p85 = scmp.eq.s32.totalorder %s84, 0
      %s87 = sadd.s32 %s86, 1
      %s88 = scalar_select %p85, %s86, %s87
      %p91 = pneg %p85
      %p92 = scmp.eq.s32.totalorder %s15, 1
      %p93 = por %p91, %p92
      %p94 = scmp.ne.s32.totalorder %s86, %s89
      %p95 = scmp.eq.s32.totalorder %s15, 0
      %p96 = por %p94, %p95
      %p97 = scmp.ne.s32.totalorder %s86, %s89
      %p98 = scmp.eq.s32.totalorder %s20, 1
      %p99 = por %p97, %p98
      %p100 = scmp.ne.s32.totalorder %s89, %s90
      %p101 = scmp.eq.s32.totalorder %s20, 0
      %p102 = por %p100, %p101
      %p103 = scmp.ne.s32.totalorder %s89, %s90
      %p104 = scmp.eq.s32.totalorder %s21, 1
      %p105 = por %p103, %p104
      %p107 = scmp.ne.s32.totalorder %s90, %s106
      %p108 = scmp.eq.s32.totalorder %s21, 0
      %p109 = por %p107, %p108
      %p110 = scmp.le.s32.totalorder 1, %s15
      %p111 = scmp.lt.s32.totalorder %s15, 3
      %p112 = pnand %p110, %p111
      %p113 = pneg %p112
      // Predicated region
      $region9: #{tpu_custom_call.1} parent=5 // pred_check
        _
      $region10: #{tpu_custom_call.1} parent=5 // pred_check_branch
        %115 = sbr.rel (%p112) target = $region12
      $region11: #{tpu_custom_call.1} parent=5 // pred_region
        %s116 = ssub.s32 %s15, 1
        // Predicated region
        $region13: #{tpu_custom_call.1} parent=11 // pred_check
          %p117 = pneg %p48
        $region14: #{tpu_custom_call.1} parent=11 // pred_check_branch
          %119 = sbr.rel (%p117) target = $region16
        $region15: #{tpu_custom_call.1} parent=11 // pred_region
          %s121 = ssub.s32 128, 128
          %122 = vsyncadd [#allocation7], %s121
          %125 = dma.hbm_to_smem %s0, 128, [#allocation4], [#allocation7]
        $region16: #{tpu_custom_call.1} parent=11 // pred_fallthru
          _
      $region12: #{tpu_custom_call.1} parent=5 // pred_fallthru
        _
      %p126 = scmp.lt.s32.totalorder %s15, 2
      // Predicated region
      $region17: #{tpu_custom_call.1} parent=5 // pred_check
        %p127 = pneg %p126
      $region18: #{tpu_custom_call.1} parent=5 // pred_check_branch
        %129 = sbr.rel (%p127) target = $region20
      $region19: #{tpu_custom_call.1} parent=5 // pred_region
        // Predicated region
        $region21: #{tpu_custom_call.1} parent=19 // pred_check
          %p130 = pneg %p68
        $region22: #{tpu_custom_call.1} parent=19 // pred_check_branch
          %132 = sbr.rel (%p130) target = $region24
        $region23: #{tpu_custom_call.1} parent=19 // pred_region
          %s133 = sand.u32 %s58, 1
          %s134 = scalar_lea.sflag [#allocation5], %s133
          %s135 = sand.u32 %s58, 1
          %s136 = smul.addr %s135, 256
          %s137 = scalar_lea.vmem [#allocation8], %s136
          %s139 = ssub.s32 4096, 4096
          %140 = vsyncadd %s134, %s139
          %s141 = smul.addr %s22, 32
          %s142 = smul.addr %s141, 128
          %s143 = scalar_lea.hbm %s1, %s142
          %s144 = sshll.u32 %s137, 4
          %s145 = int_to_ptr.vmem [resolvable:$true] %s144
          %150 = dma.hbm_to_vmem [thread:$0]  %s143, 4096, %s145, %s134, 256, 256, 16
        $region24: #{tpu_custom_call.1} parent=19 // pred_fallthru
          _
      $region20: #{tpu_custom_call.1} parent=5 // pred_fallthru
        _
      %p151 = scmp.le.s32.totalorder 1, %s15
      %p152 = scmp.lt.s32.totalorder %s15, 3
      %p153 = pnand %p151, %p152
      %p154 = pneg %p153
      // Predicated region
      $region25: #{tpu_custom_call.1} parent=5 // pred_check
        _
      $region26: #{tpu_custom_call.1} parent=5 // pred_check_branch
        %156 = sbr.rel (%p153) target = $region28
      $region27: #{tpu_custom_call.1} parent=5 // pred_region
        %s157 = ssub.s32 %s15, 1
        // Predicated region
        $region29: #{tpu_custom_call.1} parent=27 // pred_check
          %p158 = pneg %p48
        $region30: #{tpu_custom_call.1} parent=27 // pred_check_branch
          %160 = sbr.rel (%p158) target = $region32
        $region31: #{tpu_custom_call.1} parent=27 // pred_region
          %161 = dma.done [#allocation7], 128
        $region32: #{tpu_custom_call.1} parent=27 // pred_fallthru
          _
        %s162 = sand.u32 %s61, 1
        %s163 = scalar_lea.sflag [#allocation5], %s162
        %s164 = sand.u32 %s61, 1
        %s165 = smul.addr %s164, 256
        %s166 = scalar_lea.vmem [#allocation8], %s165
        // Predicated region
        $region33: #{tpu_custom_call.1} parent=27 // pred_check
          %p167 = pneg %p74
        $region34: #{tpu_custom_call.1} parent=27 // pred_check_branch
          %169 = sbr.rel (%p167) target = $region36
        $region35: #{tpu_custom_call.1} parent=27 // pred_region
          %170 = dma.done %s163, 4096
        $region36: #{tpu_custom_call.1} parent=27 // pred_fallthru
          _
        %171 = sfence
        %p172 = pneg %p48
        %p173 = pneg %p45
        %s174 = sand.u32 %s61, 1
        %s175 = scalar_lea.sflag [#allocation5], %s174
        %s176 = sand.u32 %s61, 1
        %s177 = smul.addr %s176, 256
        %s178 = scalar_lea.vmem [#allocation8], %s177
        %p179 = pneg %p74
        %p180 = pneg %p71
        %p181 = pneg %p102
        %p182 = pneg %p99
        %s183 = sand.u32 %s89, 1
        %s184 = scalar_lea.sflag [#allocation6], %s183
        %s185 = sand.u32 %s89, 1
        %s186 = smul.addr %s185, 1024
        %s187 = scalar_lea.vmem [#allocation9], %s186
        %s188 = smul.u32 4, %s25
        %p189 = scmp.eq.s32.totalorder %s25, 0
        // Predicated region
        $region37: #{tpu_custom_call.1} parent=27 // pred_check
          %p190 = pneg %p189
        $region38: #{tpu_custom_call.1} parent=27 // pred_check_branch
          %192 = sbr.rel (%p190) target = $region40
        $region39: #{tpu_custom_call.1} parent=27 // pred_region
          %v193 = vld [vmem:[%s166] sm:$0xff]
          %v194 = vld [vmem:[%s166 + $0x8] sm:$0xff]
          %v195 = vld [vmem:[%s166 + $0x10] sm:$0xff]
          %v196 = vld [vmem:[%s166 + $0x18] sm:$0xff]
          %v197 = vld [vmem:[%s166 + $0x20] sm:$0xff]
          %v198 = vld [vmem:[%s166 + $0x28] sm:$0xff]
          %v199 = vld [vmem:[%s166 + $0x30] sm:$0xff]
          %v200 = vld [vmem:[%s166 + $0x38] sm:$0xff]
          %v201 = vld [vmem:[%s166 + $0x40] sm:$0xff]
          %v202 = vld [vmem:[%s166 + $0x48] sm:$0xff]
          %v203 = vld [vmem:[%s166 + $0x50] sm:$0xff]
          %v204 = vld [vmem:[%s166 + $0x58] sm:$0xff]
          %v205 = vld [vmem:[%s166 + $0x60] sm:$0xff]
          %v206 = vld [vmem:[%s166 + $0x68] sm:$0xff]
          %v207 = vld [vmem:[%s166 + $0x70] sm:$0xff]
          %v208 = vld [vmem:[%s166 + $0x78] sm:$0xff]
          %v209 = vld [vmem:[%s166 + $0x80] sm:$0xff]
          %v210 = vld [vmem:[%s166 + $0x88] sm:$0xff]
          %v211 = vld [vmem:[%s166 + $0x90] sm:$0xff]
          %v212 = vld [vmem:[%s166 + $0x98] sm:$0xff]
          %v213 = vld [vmem:[%s166 + $0xa0] sm:$0xff]
          %v214 = vld [vmem:[%s166 + $0xa8] sm:$0xff]
          %v215 = vld [vmem:[%s166 + $0xb0] sm:$0xff]
          %v216 = vld [vmem:[%s166 + $0xb8] sm:$0xff]
          %v217 = vld [vmem:[%s166 + $0xc0] sm:$0xff]
          %v218 = vld [vmem:[%s166 + $0xc8] sm:$0xff]
          %v219 = vld [vmem:[%s166 + $0xd0] sm:$0xff]
          %v220 = vld [vmem:[%s166 + $0xd8] sm:$0xff]
          %v221 = vld [vmem:[%s166 + $0xe0] sm:$0xff]
          %v222 = vld [vmem:[%s166 + $0xe8] sm:$0xff]
          %v223 = vld [vmem:[%s166 + $0xf0] sm:$0xff]
          %v224 = vld [vmem:[%s166 + $0xf8] sm:$0xff]
          %225 = vxpose.xlu0.b32.start [1/16] %v193, 128
          %226 = vxpose.xlu0.b32.cont [2/16] %v195, 128
          %227 = vxpose.xlu0.b32.cont [3/16] %v197, 128
          %228 = vxpose.xlu0.b32.cont [4/16] %v199, 128
          %229 = vxpose.xlu0.b32.cont [5/16] %v201, 128
          %230 = vxpose.xlu0.b32.cont [6/16] %v203, 128
          %231 = vxpose.xlu0.b32.cont [7/16] %v205, 128
          %232 = vxpose.xlu0.b32.cont [8/16] %v207, 128
          %233 = vxpose.xlu0.b32.cont [9/16] %v209, 128
          %234 = vxpose.xlu0.b32.cont [10/16] %v211, 128
          %235 = vxpose.xlu0.b32.cont [11/16] %v213, 128
          %236 = vxpose.xlu0.b32.cont [12/16] %v215, 128
          %237 = vxpose.xlu0.b32.cont [13/16] %v217, 128
          %238 = vxpose.xlu0.b32.cont [14/16] %v219, 128
          %239 = vxpose.xlu0.b32.cont [15/16] %v221, 128
          %240 = vxpose.xlu0.b32.end [16/16] %v223, 128
          %v241 = vpop.trf.xlu0
          %v242 = vpop.trf.xlu0
          %v243 = vpop.trf.xlu0
          %v244 = vpop.trf.xlu0
          %v245 = vpop.trf.xlu0
          %v246 = vpop.trf.xlu0
          %v247 = vpop.trf.xlu0
          %v248 = vpop.trf.xlu0
          %v249 = vpop.trf.xlu0
          %v250 = vpop.trf.xlu0
          %v251 = vpop.trf.xlu0
          %v252 = vpop.trf.xlu0
          %v253 = vpop.trf.xlu0
          %v254 = vpop.trf.xlu0
          %v255 = vpop.trf.xlu0
          %v256 = vpop.trf.xlu0
          %257 = vxpose.xlu0.b32.start [1/16] %v194, 128
          %258 = vxpose.xlu0.b32.cont [2/16] %v196, 128
          %259 = vxpose.xlu0.b32.cont [3/16] %v198, 128
          %260 = vxpose.xlu0.b32.cont [4/16] %v200, 128
          %261 = vxpose.xlu0.b32.cont [5/16] %v202, 128
          %262 = vxpose.xlu0.b32.cont [6/16] %v204, 128
          %263 = vxpose.xlu0.b32.cont [7/16] %v206, 128
          %264 = vxpose.xlu0.b32.cont [8/16] %v208, 128
          %265 = vxpose.xlu0.b32.cont [9/16] %v210, 128
          %266 = vxpose.xlu0.b32.cont [10/16] %v212, 128
          %267 = vxpose.xlu0.b32.cont [11/16] %v214, 128
          %268 = vxpose.xlu0.b32.cont [12/16] %v216, 128
          %269 = vxpose.xlu0.b32.cont [13/16] %v218, 128
          %270 = vxpose.xlu0.b32.cont [14/16] %v220, 128
          %271 = vxpose.xlu0.b32.cont [15/16] %v222, 128
          %272 = vxpose.xlu0.b32.end [16/16] %v224, 128
          %v273 = vpop.trf.xlu0
          %v274 = vpop.trf.xlu0
          %v275 = vpop.trf.xlu0
          %v276 = vpop.trf.xlu0
          %v277 = vpop.trf.xlu0
          %v278 = vpop.trf.xlu0
          %v279 = vpop.trf.xlu0
          %v280 = vpop.trf.xlu0
          %v281 = vpop.trf.xlu0
          %v282 = vpop.trf.xlu0
          %v283 = vpop.trf.xlu0
          %v284 = vpop.trf.xlu0
          %v285 = vpop.trf.xlu0
          %v286 = vpop.trf.xlu0
          %v287 = vpop.trf.xlu0
          %v288 = vpop.trf.xlu0
          %289 = vst [vmem:[#allocation2] sm:$0xff] %v241
          %290 = vst [vmem:[#allocation2 + $0x8] sm:$0xff] %v242
          %291 = vst [vmem:[#allocation2 + $0x10] sm:$0xff] %v243
          %292 = vst [vmem:[#allocation2 + $0x18] sm:$0xff] %v244
          %293 = vst [vmem:[#allocation2 + $0x20] sm:$0xff] %v245
          %294 = vst [vmem:[#allocation2 + $0x28] sm:$0xff] %v246
          %295 = vst [vmem:[#allocation2 + $0x30] sm:$0xff] %v247
          %296 = vst [vmem:[#allocation2 + $0x38] sm:$0xff] %v248
          %297 = vst [vmem:[#allocation2 + $0x40] sm:$0xff] %v249
          %298 = vst [vmem:[#allocation2 + $0x48] sm:$0xff] %v250
          %299 = vst [vmem:[#allocation2 + $0x50] sm:$0xff] %v251
          %300 = vst [vmem:[#allocation2 + $0x58] sm:$0xff] %v252
          %301 = vst [vmem:[#allocation2 + $0x60] sm:$0xff] %v253
          %302 = vst [vmem:[#allocation2 + $0x68] sm:$0xff] %v254
          %303 = vst [vmem:[#allocation2 + $0x70] sm:$0xff] %v255
          %304 = vst [vmem:[#allocation2 + $0x78] sm:$0xff] %v256
          %305 = vst [vmem:[#allocation2 + $0x80] sm:$0xff] %v273
          %306 = vst [vmem:[#allocation2 + $0x88] sm:$0xff] %v274
          %307 = vst [vmem:[#allocation2 + $0x90] sm:$0xff] %v275
          %308 = vst [vmem:[#allocation2 + $0x98] sm:$0xff] %v276
          %309 = vst [vmem:[#allocation2 + $0xa0] sm:$0xff] %v277
          %310 = vst [vmem:[#allocation2 + $0xa8] sm:$0xff] %v278
          %311 = vst [vmem:[#allocation2 + $0xb0] sm:$0xff] %v279
          %312 = vst [vmem:[#allocation2 + $0xb8] sm:$0xff] %v280
          %313 = vst [vmem:[#allocation2 + $0xc0] sm:$0xff] %v281
          %314 = vst [vmem:[#allocation2 + $0xc8] sm:$0xff] %v282
          %315 = vst [vmem:[#allocation2 + $0xd0] sm:$0xff] %v283
          %316 = vst [vmem:[#allocation2 + $0xd8] sm:$0xff] %v284
          %317 = vst [vmem:[#allocation2 + $0xe0] sm:$0xff] %v285
          %318 = vst [vmem:[#allocation2 + $0xe8] sm:$0xff] %v286
          %319 = vst [vmem:[#allocation2 + $0xf0] sm:$0xff] %v287
          %320 = vst [vmem:[#allocation2 + $0xf8] sm:$0xff] %v288
        $region40: #{tpu_custom_call.1} parent=27 // pred_fallthru
          _
        %s321 = smul.u32 %s25, 4
        loop: start=0, step=1, limit=32
        $region41: #{tpu_custom_call.1} parent=27 // loop_pre_header
          _
        $region42: #{tpu_custom_call.1} parent=27 // loop_header
          %s323 = sphi 0, %s327
          %p324 = scmp.ge.s32.totalorder %s323, 32
        $region43: #{tpu_custom_call.1} parent=27 // loop_header_branch
          %326 = sbr.rel (%p324) target = $region47
        $region44: #{tpu_custom_call.1} parent=27 // loop_body
          %s328 = smul.u32 %s323, 8
          %s329 = sshra.s32 %s328, 7
          %s330 = sand.u32 %s328, 127
          %s331 = sshra.s32 %s321, 2
          %s332 = sand.u32 %s321, 3
          %s333 = smul.u32 %s331, 2
          %s334 = sadd.s32 %s329, %s333
          %s335 = smul.u32 %s334, 512
          %s336 = sshra.s32 %s321, 2
          %s337 = sand.u32 %s321, 3
          %s338 = sshra.s32 %s328, 7
          %s339 = sand.u32 %s328, 127
          %s340 = smul.u32 %s337, 128
          %s341 = sadd.s32 %s340, %s339
          %s342 = sadd.s32 %s335, %s341
          %s343 = sld [smem:[#allocation4 + %s342]]
          %s344 = scalar_lea.vmem [#allocation2], %s343
          %v345 = vld [vmem:[%s344] sm:$0x1]
          %s346 = sadd.s32 %s328, 1
          %s347 = sshra.s32 %s346, 7
          %s348 = sand.u32 %s346, 127
          %s349 = sadd.s32 %s347, %s333
          %s350 = smul.u32 %s349, 512
          %s351 = sshra.s32 %s346, 7
          %s352 = sand.u32 %s346, 127
          %s353 = sadd.s32 %s340, %s352
          %s354 = sadd.s32 %s350, %s353
          %s355 = sld [smem:[#allocation4 + %s354]]
          %s356 = scalar_lea.vmem [#allocation2], %s355
          %v357 = vld [vmem:[%s356] sm:$0x1]
          %s358 = sadd.s32 %s328, 2
          %s359 = sshra.s32 %s358, 7
          %s360 = sand.u32 %s358, 127
          %s361 = sadd.s32 %s359, %s333
          %s362 = smul.u32 %s361, 512
          %s363 = sshra.s32 %s358, 7
          %s364 = sand.u32 %s358, 127
          %s365 = sadd.s32 %s340, %s364
          %s366 = sadd.s32 %s362, %s365
          %s367 = sld [smem:[#allocation4 + %s366]]
          %s368 = scalar_lea.vmem [#allocation2], %s367
          %v369 = vld [vmem:[%s368] sm:$0x1]
          %s370 = sadd.s32 %s328, 3
          %s371 = sshra.s32 %s370, 7
          %s372 = sand.u32 %s370, 127
          %s373 = sadd.s32 %s371, %s333
          %s374 = smul.u32 %s373, 512
          %s375 = sshra.s32 %s370, 7
          %s376 = sand.u32 %s370, 127
          %s377 = sadd.s32 %s340, %s376
          %s378 = sadd.s32 %s374, %s377
          %s379 = sld [smem:[#allocation4 + %s378]]
          %s380 = scalar_lea.vmem [#allocation2], %s379
          %v381 = vld [vmem:[%s380] sm:$0x1]
          %s382 = sadd.s32 %s328, 4
          %s383 = sshra.s32 %s382, 7
          %s384 = sand.u32 %s382, 127
          %s385 = sadd.s32 %s383, %s333
          %s386 = smul.u32 %s385, 512
          %s387 = sshra.s32 %s382, 7
          %s388 = sand.u32 %s382, 127
          %s389 = sadd.s32 %s340, %s388
          %s390 = sadd.s32 %s386, %s389
          %s391 = sld [smem:[#allocation4 + %s390]]
          %s392 = scalar_lea.vmem [#allocation2], %s391
          %v393 = vld [vmem:[%s392] sm:$0x1]
          %s394 = sadd.s32 %s328, 5
          %s395 = sshra.s32 %s394, 7
          %s396 = sand.u32 %s394, 127
          %s397 = sadd.s32 %s395, %s333
          %s398 = smul.u32 %s397, 512
          %s399 = sshra.s32 %s394, 7
          %s400 = sand.u32 %s394, 127
          %s401 = sadd.s32 %s340, %s400
          %s402 = sadd.s32 %s398, %s401
          %s403 = sld [smem:[#allocation4 + %s402]]
          %s404 = scalar_lea.vmem [#allocation2], %s403
          %v405 = vld [vmem:[%s404] sm:$0x1]
          %s406 = sadd.s32 %s328, 6
          %s407 = sshra.s32 %s406, 7
          %s408 = sand.u32 %s406, 127
          %s409 = sadd.s32 %s407, %s333
          %s410 = smul.u32 %s409, 512
          %s411 = sshra.s32 %s406, 7
          %s412 = sand.u32 %s406, 127
          %s413 = sadd.s32 %s340, %s412
          %s414 = sadd.s32 %s410, %s413
          %s415 = sld [smem:[#allocation4 + %s414]]
          %s416 = scalar_lea.vmem [#allocation2], %s415
          %v417 = vld [vmem:[%s416] sm:$0x1]
          %s418 = sadd.s32 %s328, 7
          %s419 = sshra.s32 %s418, 7
          %s420 = sand.u32 %s418, 127
          %s421 = sadd.s32 %s419, %s333
          %s422 = smul.u32 %s421, 512
          %s423 = sshra.s32 %s418, 7
          %s424 = sand.u32 %s418, 127
          %s425 = sadd.s32 %s340, %s424
          %s426 = sadd.s32 %s422, %s425
          %s427 = sld [smem:[#allocation4 + %s426]]
          %s428 = scalar_lea.vmem [#allocation2], %s427
          %v429 = vld [vmem:[%s428] sm:$0x1]
          %v431 = vrot.slane %v357, 7
          %v434 = vrot.slane %v369, 6
          %v437 = vrot.slane %v381, 5
          %v440 = vrot.slane %v393, 4
          %v443 = vrot.slane %v405, 3
          %v446 = vrot.slane %v417, 2
          %v449 = vrot.slane %v429, 1
          %vm451 = vcmask 1040384
          %v452 = vsel %vm451, %v345, %v431
          %vm453 = vcmask 1041408
          %v454 = vsel %vm453, %v452, %v434
          %vm455 = vcmask 1042432
          %v456 = vsel %vm455, %v454, %v437
          %vm457 = vcmask 1043456
          %v458 = vsel %vm457, %v456, %v440
          %vm459 = vcmask 1044480
          %v460 = vsel %vm459, %v458, %v443
          %vm461 = vcmask 1045504
          %v462 = vsel %vm461, %v460, %v446
          %vm463 = vcmask 1046528
          %v464 = vsel %vm463, %v462, %v449
          %s465 = scalar_lea.vmem [#allocation3], %s328
          %466 = vst [vmem:[%s465] sm:$0xff] %v464
        $region45: #{tpu_custom_call.1} parent=27 // loop_footer
          %s327 = sadd.s32 1, %s323
        $region46: #{tpu_custom_call.1} parent=27 // loop_footer_branch
          %322 = sbr.rel target = $region42
        $region47: #{tpu_custom_call.1} parent=27 // loop_exit
          _
        %v467 = vld [vmem:[#allocation3] sm:$0xff]
        %v468 = vld [vmem:[#allocation3 + $0x8] sm:$0xff]
        %v469 = vld [vmem:[#allocation3 + $0x10] sm:$0xff]
        %v470 = vld [vmem:[#allocation3 + $0x18] sm:$0xff]
        %v471 = vld [vmem:[#allocation3 + $0x20] sm:$0xff]
        %v472 = vld [vmem:[#allocation3 + $0x28] sm:$0xff]
        %v473 = vld [vmem:[#allocation3 + $0x30] sm:$0xff]
        %v474 = vld [vmem:[#allocation3 + $0x38] sm:$0xff]
        %v475 = vld [vmem:[#allocation3 + $0x40] sm:$0xff]
        %v476 = vld [vmem:[#allocation3 + $0x48] sm:$0xff]
        %v477 = vld [vmem:[#allocation3 + $0x50] sm:$0xff]
        %v478 = vld [vmem:[#allocation3 + $0x58] sm:$0xff]
        %v479 = vld [vmem:[#allocation3 + $0x60] sm:$0xff]
        %v480 = vld [vmem:[#allocation3 + $0x68] sm:$0xff]
        %v481 = vld [vmem:[#allocation3 + $0x70] sm:$0xff]
        %v482 = vld [vmem:[#allocation3 + $0x78] sm:$0xff]
        %v483 = vld [vmem:[#allocation3 + $0x80] sm:$0xff]
        %v484 = vld [vmem:[#allocation3 + $0x88] sm:$0xff]
        %v485 = vld [vmem:[#allocation3 + $0x90] sm:$0xff]
        %v486 = vld [vmem:[#allocation3 + $0x98] sm:$0xff]
        %v487 = vld [vmem:[#allocation3 + $0xa0] sm:$0xff]
        %v488 = vld [vmem:[#allocation3 + $0xa8] sm:$0xff]
        %v489 = vld [vmem:[#allocation3 + $0xb0] sm:$0xff]
        %v490 = vld [vmem:[#allocation3 + $0xb8] sm:$0xff]
        %v491 = vld [vmem:[#allocation3 + $0xc0] sm:$0xff]
        %v492 = vld [vmem:[#allocation3 + $0xc8] sm:$0xff]
        %v493 = vld [vmem:[#allocation3 + $0xd0] sm:$0xff]
        %v494 = vld [vmem:[#allocation3 + $0xd8] sm:$0xff]
        %v495 = vld [vmem:[#allocation3 + $0xe0] sm:$0xff]
        %v496 = vld [vmem:[#allocation3 + $0xe8] sm:$0xff]
        %v497 = vld [vmem:[#allocation3 + $0xf0] sm:$0xff]
        %v498 = vld [vmem:[#allocation3 + $0xf8] sm:$0xff]
        %499 = vxpose.xlu0.b32.start [1/16] %v467, 128
        %500 = vxpose.xlu0.b32.cont [2/16] %v468, 128
        %501 = vxpose.xlu0.b32.cont [3/16] %v469, 128
        %502 = vxpose.xlu0.b32.cont [4/16] %v470, 128
        %503 = vxpose.xlu0.b32.cont [5/16] %v471, 128
        %504 = vxpose.xlu0.b32.cont [6/16] %v472, 128
        %505 = vxpose.xlu0.b32.cont [7/16] %v473, 128
        %506 = vxpose.xlu0.b32.cont [8/16] %v474, 128
        %507 = vxpose.xlu0.b32.cont [9/16] %v475, 128
        %508 = vxpose.xlu0.b32.cont [10/16] %v476, 128
        %509 = vxpose.xlu0.b32.cont [11/16] %v477, 128
        %510 = vxpose.xlu0.b32.cont [12/16] %v478, 128
        %511 = vxpose.xlu0.b32.cont [13/16] %v479, 128
        %512 = vxpose.xlu0.b32.cont [14/16] %v480, 128
        %513 = vxpose.xlu0.b32.cont [15/16] %v481, 128
        %514 = vxpose.xlu0.b32.end [16/16] %v482, 128
        %v515 = vpop.trf.xlu0
        %v516 = vpop.trf.xlu0
        %v517 = vpop.trf.xlu0
        %v518 = vpop.trf.xlu0
        %v519 = vpop.trf.xlu0
        %v520 = vpop.trf.xlu0
        %v521 = vpop.trf.xlu0
        %v522 = vpop.trf.xlu0
        %v523 = vpop.trf.xlu0
        %v524 = vpop.trf.xlu0
        %v525 = vpop.trf.xlu0
        %v526 = vpop.trf.xlu0
        %v527 = vpop.trf.xlu0
        %v528 = vpop.trf.xlu0
        %v529 = vpop.trf.xlu0
        %v530 = vpop.trf.xlu0
        %531 = vxpose.xlu0.b32.start [1/16] %v483, 128
        %532 = vxpose.xlu0.b32.cont [2/16] %v484, 128
        %533 = vxpose.xlu0.b32.cont [3/16] %v485, 128
        %534 = vxpose.xlu0.b32.cont [4/16] %v486, 128
        %535 = vxpose.xlu0.b32.cont [5/16] %v487, 128
        %536 = vxpose.xlu0.b32.cont [6/16] %v488, 128
        %537 = vxpose.xlu0.b32.cont [7/16] %v489, 128
        %538 = vxpose.xlu0.b32.cont [8/16] %v490, 128
        %539 = vxpose.xlu0.b32.cont [9/16] %v491, 128
        %540 = vxpose.xlu0.b32.cont [10/16] %v492, 128
        %541 = vxpose.xlu0.b32.cont [11/16] %v493, 128
        %542 = vxpose.xlu0.b32.cont [12/16] %v494, 128
        %543 = vxpose.xlu0.b32.cont [13/16] %v495, 128
        %544 = vxpose.xlu0.b32.cont [14/16] %v496, 128
        %545 = vxpose.xlu0.b32.cont [15/16] %v497, 128
        %546 = vxpose.xlu0.b32.end [16/16] %v498, 128
        %v547 = vpop.trf.xlu0
        %v548 = vpop.trf.xlu0
        %v549 = vpop.trf.xlu0
        %v550 = vpop.trf.xlu0
        %v551 = vpop.trf.xlu0
        %v552 = vpop.trf.xlu0
        %v553 = vpop.trf.xlu0
        %v554 = vpop.trf.xlu0
        %v555 = vpop.trf.xlu0
        %v556 = vpop.trf.xlu0
        %v557 = vpop.trf.xlu0
        %v558 = vpop.trf.xlu0
        %v559 = vpop.trf.xlu0
        %v560 = vpop.trf.xlu0
        %v561 = vpop.trf.xlu0
        %v562 = vpop.trf.xlu0
        %563 = vst [vmem:[%s187] sm:$0xff] %v515
        %564 = vst [vmem:[%s187 + $0x8] sm:$0xff] %v547
        %565 = vst [vmem:[%s187 + $0x10] sm:$0xff] %v516
        %566 = vst [vmem:[%s187 + $0x18] sm:$0xff] %v548
        %567 = vst [vmem:[%s187 + $0x20] sm:$0xff] %v517
        %568 = vst [vmem:[%s187 + $0x28] sm:$0xff] %v549
        %569 = vst [vmem:[%s187 + $0x30] sm:$0xff] %v518
        %570 = vst [vmem:[%s187 + $0x38] sm:$0xff] %v550
        %571 = vst [vmem:[%s187 + $0x40] sm:$0xff] %v519
        %572 = vst [vmem:[%s187 + $0x48] sm:$0xff] %v551
        %573 = vst [vmem:[%s187 + $0x50] sm:$0xff] %v520
        %574 = vst [vmem:[%s187 + $0x58] sm:$0xff] %v552
        %575 = vst [vmem:[%s187 + $0x60] sm:$0xff] %v521
        %576 = vst [vmem:[%s187 + $0x68] sm:$0xff] %v553
        %577 = vst [vmem:[%s187 + $0x70] sm:$0xff] %v522
        %578 = vst [vmem:[%s187 + $0x78] sm:$0xff] %v554
        %579 = vst [vmem:[%s187 + $0x80] sm:$0xff] %v523
        %580 = vst [vmem:[%s187 + $0x88] sm:$0xff] %v555
        %581 = vst [vmem:[%s187 + $0x90] sm:$0xff] %v524
        %582 = vst [vmem:[%s187 + $0x98] sm:$0xff] %v556
        %583 = vst [vmem:[%s187 + $0xa0] sm:$0xff] %v525
        %584 = vst [vmem:[%s187 + $0xa8] sm:$0xff] %v557
        %585 = vst [vmem:[%s187 + $0xb0] sm:$0xff] %v526
        %586 = vst [vmem:[%s187 + $0xb8] sm:$0xff] %v558
        %587 = vst [vmem:[%s187 + $0xc0] sm:$0xff] %v527
        %588 = vst [vmem:[%s187 + $0xc8] sm:$0xff] %v559
        %589 = vst [vmem:[%s187 + $0xd0] sm:$0xff] %v528
        %590 = vst [vmem:[%s187 + $0xd8] sm:$0xff] %v560
        %591 = vst [vmem:[%s187 + $0xe0] sm:$0xff] %v529
        %592 = vst [vmem:[%s187 + $0xe8] sm:$0xff] %v561
        %593 = vst [vmem:[%s187 + $0xf0] sm:$0xff] %v530
        %594 = vst [vmem:[%s187 + $0xf8] sm:$0xff] %v562
        %s595 = sadd.s32 %s321, 1
        loop: start=0, step=1, limit=32
        $region48: #{tpu_custom_call.1} parent=27 // loop_pre_header
          _
        $region49: #{tpu_custom_call.1} parent=27 // loop_header
          %s597 = sphi 0, %s601
          %p598 = scmp.ge.s32.totalorder %s597, 32
        $region50: #{tpu_custom_call.1} parent=27 // loop_header_branch
          %600 = sbr.rel (%p598) target = $region54
        $region51: #{tpu_custom_call.1} parent=27 // loop_body
          %s602 = smul.u32 %s597, 8
          %s603 = sshra.s32 %s602, 7
          %s604 = sand.u32 %s602, 127
          %s605 = sshra.s32 %s595, 2
          %s606 = sand.u32 %s595, 3
          %s607 = smul.u32 %s605, 2
          %s608 = sadd.s32 %s603, %s607
          %s609 = smul.u32 %s608, 512
          %s610 = sshra.s32 %s595, 2
          %s611 = sand.u32 %s595, 3
          %s612 = sshra.s32 %s602, 7
          %s613 = sand.u32 %s602, 127
          %s614 = smul.u32 %s611, 128
          %s615 = sadd.s32 %s614, %s613
          %s616 = sadd.s32 %s609, %s615
          %s617 = sld [smem:[#allocation4 + %s616]]
          %s618 = scalar_lea.vmem [#allocation2], %s617
          %v619 = vld [vmem:[%s618] sm:$0x1]
          %s620 = sadd.s32 %s602, 1
          %s621 = sshra.s32 %s620, 7
          %s622 = sand.u32 %s620, 127
          %s623 = sadd.s32 %s621, %s607
          %s624 = smul.u32 %s623, 512
          %s625 = sshra.s32 %s620, 7
          %s626 = sand.u32 %s620, 127
          %s627 = sadd.s32 %s614, %s626
          %s628 = sadd.s32 %s624, %s627
          %s629 = sld [smem:[#allocation4 + %s628]]
          %s630 = scalar_lea.vmem [#allocation2], %s629
          %v631 = vld [vmem:[%s630] sm:$0x1]
          %s632 = sadd.s32 %s602, 2
          %s633 = sshra.s32 %s632, 7
          %s634 = sand.u32 %s632, 127
          %s635 = sadd.s32 %s633, %s607
          %s636 = smul.u32 %s635, 512
          %s637 = sshra.s32 %s632, 7
          %s638 = sand.u32 %s632, 127
          %s639 = sadd.s32 %s614, %s638
          %s640 = sadd.s32 %s636, %s639
          %s641 = sld [smem:[#allocation4 + %s640]]
          %s642 = scalar_lea.vmem [#allocation2], %s641
          %v643 = vld [vmem:[%s642] sm:$0x1]
          %s644 = sadd.s32 %s602, 3
          %s645 = sshra.s32 %s644, 7
          %s646 = sand.u32 %s644, 127
          %s647 = sadd.s32 %s645, %s607
          %s648 = smul.u32 %s647, 512
          %s649 = sshra.s32 %s644, 7
          %s650 = sand.u32 %s644, 127
          %s651 = sadd.s32 %s614, %s650
          %s652 = sadd.s32 %s648, %s651
          %s653 = sld [smem:[#allocation4 + %s652]]
          %s654 = scalar_lea.vmem [#allocation2], %s653
          %v655 = vld [vmem:[%s654] sm:$0x1]
          %s656 = sadd.s32 %s602, 4
          %s657 = sshra.s32 %s656, 7
          %s658 = sand.u32 %s656, 127
          %s659 = sadd.s32 %s657, %s607
          %s660 = smul.u32 %s659, 512
          %s661 = sshra.s32 %s656, 7
          %s662 = sand.u32 %s656, 127
          %s663 = sadd.s32 %s614, %s662
          %s664 = sadd.s32 %s660, %s663
          %s665 = sld [smem:[#allocation4 + %s664]]
          %s666 = scalar_lea.vmem [#allocation2], %s665
          %v667 = vld [vmem:[%s666] sm:$0x1]
          %s668 = sadd.s32 %s602, 5
          %s669 = sshra.s32 %s668, 7
          %s670 = sand.u32 %s668, 127
          %s671 = sadd.s32 %s669, %s607
          %s672 = smul.u32 %s671, 512
          %s673 = sshra.s32 %s668, 7
          %s674 = sand.u32 %s668, 127
          %s675 = sadd.s32 %s614, %s674
          %s676 = sadd.s32 %s672, %s675
          %s677 = sld [smem:[#allocation4 + %s676]]
          %s678 = scalar_lea.vmem [#allocation2], %s677
          %v679 = vld [vmem:[%s678] sm:$0x1]
          %s680 = sadd.s32 %s602, 6
          %s681 = sshra.s32 %s680, 7
          %s682 = sand.u32 %s680, 127
          %s683 = sadd.s32 %s681, %s607
          %s684 = smul.u32 %s683, 512
          %s685 = sshra.s32 %s680, 7
          %s686 = sand.u32 %s680, 127
          %s687 = sadd.s32 %s614, %s686
          %s688 = sadd.s32 %s684, %s687
          %s689 = sld [smem:[#allocation4 + %s688]]
          %s690 = scalar_lea.vmem [#allocation2], %s689
          %v691 = vld [vmem:[%s690] sm:$0x1]
          %s692 = sadd.s32 %s602, 7
          %s693 = sshra.s32 %s692, 7
          %s694 = sand.u32 %s692, 127
          %s695 = sadd.s32 %s693, %s607
          %s696 = smul.u32 %s695, 512
          %s697 = sshra.s32 %s692, 7
          %s698 = sand.u32 %s692, 127
          %s699 = sadd.s32 %s614, %s698
          %s700 = sadd.s32 %s696, %s699
          %s701 = sld [smem:[#allocation4 + %s700]]
          %s702 = scalar_lea.vmem [#allocation2], %s701
          %v703 = vld [vmem:[%s702] sm:$0x1]
          %v705 = vrot.slane %v631, 7
          %v708 = vrot.slane %v643, 6
          %v711 = vrot.slane %v655, 5
          %v714 = vrot.slane %v667, 4
          %v717 = vrot.slane %v679, 3
          %v720 = vrot.slane %v691, 2
          %v723 = vrot.slane %v703, 1
          %vm725 = vcmask 1040384
          %v726 = vsel %vm725, %v619, %v705
          %vm727 = vcmask 1041408
          %v728 = vsel %vm727, %v726, %v708
          %vm729 = vcmask 1042432
          %v730 = vsel %vm729, %v728, %v711
          %vm731 = vcmask 1043456
          %v732 = vsel %vm731, %v730, %v714
          %vm733 = vcmask 1044480
          %v734 = vsel %vm733, %v732, %v717
          %vm735 = vcmask 1045504
          %v736 = vsel %vm735, %v734, %v720
          %vm737 = vcmask 1046528
          %v738 = vsel %vm737, %v736, %v723
          %s739 = scalar_lea.vmem [#allocation3], %s602
          %740 = vst [vmem:[%s739] sm:$0xff] %v738
        $region52: #{tpu_custom_call.1} parent=27 // loop_footer
          %s601 = sadd.s32 1, %s597
        $region53: #{tpu_custom_call.1} parent=27 // loop_footer_branch
          %596 = sbr.rel target = $region49
        $region54: #{tpu_custom_call.1} parent=27 // loop_exit
          _
        %v741 = vld [vmem:[#allocation3] sm:$0xff]
        %v742 = vld [vmem:[#allocation3 + $0x8] sm:$0xff]
        %v743 = vld [vmem:[#allocation3 + $0x10] sm:$0xff]
        %v744 = vld [vmem:[#allocation3 + $0x18] sm:$0xff]
        %v745 = vld [vmem:[#allocation3 + $0x20] sm:$0xff]
        %v746 = vld [vmem:[#allocation3 + $0x28] sm:$0xff]
        %v747 = vld [vmem:[#allocation3 + $0x30] sm:$0xff]
        %v748 = vld [vmem:[#allocation3 + $0x38] sm:$0xff]
        %v749 = vld [vmem:[#allocation3 + $0x40] sm:$0xff]
        %v750 = vld [vmem:[#allocation3 + $0x48] sm:$0xff]
        %v751 = vld [vmem:[#allocation3 + $0x50] sm:$0xff]
        %v752 = vld [vmem:[#allocation3 + $0x58] sm:$0xff]
        %v753 = vld [vmem:[#allocation3 + $0x60] sm:$0xff]
        %v754 = vld [vmem:[#allocation3 + $0x68] sm:$0xff]
        %v755 = vld [vmem:[#allocation3 + $0x70] sm:$0xff]
        %v756 = vld [vmem:[#allocation3 + $0x78] sm:$0xff]
        %v757 = vld [vmem:[#allocation3 + $0x80] sm:$0xff]
        %v758 = vld [vmem:[#allocation3 + $0x88] sm:$0xff]
        %v759 = vld [vmem:[#allocation3 + $0x90] sm:$0xff]
        %v760 = vld [vmem:[#allocation3 + $0x98] sm:$0xff]
        %v761 = vld [vmem:[#allocation3 + $0xa0] sm:$0xff]
        %v762 = vld [vmem:[#allocation3 + $0xa8] sm:$0xff]
        %v763 = vld [vmem:[#allocation3 + $0xb0] sm:$0xff]
        %v764 = vld [vmem:[#allocation3 + $0xb8] sm:$0xff]
        %v765 = vld [vmem:[#allocation3 + $0xc0] sm:$0xff]
        %v766 = vld [vmem:[#allocation3 + $0xc8] sm:$0xff]
        %v767 = vld [vmem:[#allocation3 + $0xd0] sm:$0xff]
        %v768 = vld [vmem:[#allocation3 + $0xd8] sm:$0xff]
        %v769 = vld [vmem:[#allocation3 + $0xe0] sm:$0xff]
        %v770 = vld [vmem:[#allocation3 + $0xe8] sm:$0xff]
        %v771 = vld [vmem:[#allocation3 + $0xf0] sm:$0xff]
        %v772 = vld [vmem:[#allocation3 + $0xf8] sm:$0xff]
        %773 = vxpose.xlu0.b32.start [1/16] %v741, 128
        %774 = vxpose.xlu0.b32.cont [2/16] %v742, 128
        %775 = vxpose.xlu0.b32.cont [3/16] %v743, 128
        %776 = vxpose.xlu0.b32.cont [4/16] %v744, 128
        %777 = vxpose.xlu0.b32.cont [5/16] %v745, 128
        %778 = vxpose.xlu0.b32.cont [6/16] %v746, 128
        %779 = vxpose.xlu0.b32.cont [7/16] %v747, 128
        %780 = vxpose.xlu0.b32.cont [8/16] %v748, 128
        %781 = vxpose.xlu0.b32.cont [9/16] %v749, 128
        %782 = vxpose.xlu0.b32.cont [10/16] %v750, 128
        %783 = vxpose.xlu0.b32.cont [11/16] %v751, 128
        %784 = vxpose.xlu0.b32.cont [12/16] %v752, 128
        %785 = vxpose.xlu0.b32.cont [13/16] %v753, 128
        %786 = vxpose.xlu0.b32.cont [14/16] %v754, 128
        %787 = vxpose.xlu0.b32.cont [15/16] %v755, 128
        %788 = vxpose.xlu0.b32.end [16/16] %v756, 128
        %v789 = vpop.trf.xlu0
        %v790 = vpop.trf.xlu0
        %v791 = vpop.trf.xlu0
        %v792 = vpop.trf.xlu0
        %v793 = vpop.trf.xlu0
        %v794 = vpop.trf.xlu0
        %v795 = vpop.trf.xlu0
        %v796 = vpop.trf.xlu0
        %v797 = vpop.trf.xlu0
        %v798 = vpop.trf.xlu0
        %v799 = vpop.trf.xlu0
        %v800 = vpop.trf.xlu0
        %v801 = vpop.trf.xlu0
        %v802 = vpop.trf.xlu0
        %v803 = vpop.trf.xlu0
        %v804 = vpop.trf.xlu0
        %805 = vxpose.xlu0.b32.start [1/16] %v757, 128
        %806 = vxpose.xlu0.b32.cont [2/16] %v758, 128
        %807 = vxpose.xlu0.b32.cont [3/16] %v759, 128
        %808 = vxpose.xlu0.b32.cont [4/16] %v760, 128
        %809 = vxpose.xlu0.b32.cont [5/16] %v761, 128
        %810 = vxpose.xlu0.b32.cont [6/16] %v762, 128
        %811 = vxpose.xlu0.b32.cont [7/16] %v763, 128
        %812 = vxpose.xlu0.b32.cont [8/16] %v764, 128
        %813 = vxpose.xlu0.b32.cont [9/16] %v765, 128
        %814 = vxpose.xlu0.b32.cont [10/16] %v766, 128
        %815 = vxpose.xlu0.b32.cont [11/16] %v767, 128
        %816 = vxpose.xlu0.b32.cont [12/16] %v768, 128
        %817 = vxpose.xlu0.b32.cont [13/16] %v769, 128
        %818 = vxpose.xlu0.b32.cont [14/16] %v770, 128
        %819 = vxpose.xlu0.b32.cont [15/16] %v771, 128
        %820 = vxpose.xlu0.b32.end [16/16] %v772, 128
        %v821 = vpop.trf.xlu0
        %v822 = vpop.trf.xlu0
        %v823 = vpop.trf.xlu0
        %v824 = vpop.trf.xlu0
        %v825 = vpop.trf.xlu0
        %v826 = vpop.trf.xlu0
        %v827 = vpop.trf.xlu0
        %v828 = vpop.trf.xlu0
        %v829 = vpop.trf.xlu0
        %v830 = vpop.trf.xlu0
        %v831 = vpop.trf.xlu0
        %v832 = vpop.trf.xlu0
        %v833 = vpop.trf.xlu0
        %v834 = vpop.trf.xlu0
        %v835 = vpop.trf.xlu0
        %v836 = vpop.trf.xlu0
        %s837 = scalar_lea.vmem %s187, 256 [#allocation9]
        %838 = vst [vmem:[%s837] sm:$0xff] %v789
        %839 = vst [vmem:[%s837 + $0x8] sm:$0xff] %v821
        %840 = vst [vmem:[%s837 + $0x10] sm:$0xff] %v790
        %841 = vst [vmem:[%s837 + $0x18] sm:$0xff] %v822
        %842 = vst [vmem:[%s837 + $0x20] sm:$0xff] %v791
        %843 = vst [vmem:[%s837 + $0x28] sm:$0xff] %v823
        %844 = vst [vmem:[%s837 + $0x30] sm:$0xff] %v792
        %845 = vst [vmem:[%s837 + $0x38] sm:$0xff] %v824
        %846 = vst [vmem:[%s837 + $0x40] sm:$0xff] %v793
        %847 = vst [vmem:[%s837 + $0x48] sm:$0xff] %v825
        %848 = vst [vmem:[%s837 + $0x50] sm:$0xff] %v794
        %849 = vst [vmem:[%s837 + $0x58] sm:$0xff] %v826
        %850 = vst [vmem:[%s837 + $0x60] sm:$0xff] %v795
        %851 = vst [vmem:[%s837 + $0x68] sm:$0xff] %v827
        %852 = vst [vmem:[%s837 + $0x70] sm:$0xff] %v796
        %853 = vst [vmem:[%s837 + $0x78] sm:$0xff] %v828
        %854 = vst [vmem:[%s837 + $0x80] sm:$0xff] %v797
        %855 = vst [vmem:[%s837 + $0x88] sm:$0xff] %v829
        %856 = vst [vmem:[%s837 + $0x90] sm:$0xff] %v798
        %857 = vst [vmem:[%s837 + $0x98] sm:$0xff] %v830
        %858 = vst [vmem:[%s837 + $0xa0] sm:$0xff] %v799
        %859 = vst [vmem:[%s837 + $0xa8] sm:$0xff] %v831
        %860 = vst [vmem:[%s837 + $0xb0] sm:$0xff] %v800
        %861 = vst [vmem:[%s837 + $0xb8] sm:$0xff] %v832
        %862 = vst [vmem:[%s837 + $0xc0] sm:$0xff] %v801
        %863 = vst [vmem:[%s837 + $0xc8] sm:$0xff] %v833
        %864 = vst [vmem:[%s837 + $0xd0] sm:$0xff] %v802
        %865 = vst [vmem:[%s837 + $0xd8] sm:$0xff] %v834
        %866 = vst [vmem:[%s837 + $0xe0] sm:$0xff] %v803
        %867 = vst [vmem:[%s837 + $0xe8] sm:$0xff] %v835
        %868 = vst [vmem:[%s837 + $0xf0] sm:$0xff] %v804
        %869 = vst [vmem:[%s837 + $0xf8] sm:$0xff] %v836
        %s870 = sadd.s32 %s321, 2
        loop: start=0, step=1, limit=32
        $region55: #{tpu_custom_call.1} parent=27 // loop_pre_header
          _
        $region56: #{tpu_custom_call.1} parent=27 // loop_header
          %s872 = sphi 0, %s876
          %p873 = scmp.ge.s32.totalorder %s872, 32
        $region57: #{tpu_custom_call.1} parent=27 // loop_header_branch
          %875 = sbr.rel (%p873) target = $region61
        $region58: #{tpu_custom_call.1} parent=27 // loop_body
          %s877 = smul.u32 %s872, 8
          %s878 = sshra.s32 %s877, 7
          %s879 = sand.u32 %s877, 127
          %s880 = sshra.s32 %s870, 2
          %s881 = sand.u32 %s870, 3
          %s882 = smul.u32 %s880, 2
          %s883 = sadd.s32 %s878, %s882
          %s884 = smul.u32 %s883, 512
          %s885 = sshra.s32 %s870, 2
          %s886 = sand.u32 %s870, 3
          %s887 = sshra.s32 %s877, 7
          %s888 = sand.u32 %s877, 127
          %s889 = smul.u32 %s886, 128
          %s890 = sadd.s32 %s889, %s888
          %s891 = sadd.s32 %s884, %s890
          %s892 = sld [smem:[#allocation4 + %s891]]
          %s893 = scalar_lea.vmem [#allocation2], %s892
          %v894 = vld [vmem:[%s893] sm:$0x1]
          %s895 = sadd.s32 %s877, 1
          %s896 = sshra.s32 %s895, 7
          %s897 = sand.u32 %s895, 127
          %s898 = sadd.s32 %s896, %s882
          %s899 = smul.u32 %s898, 512
          %s900 = sshra.s32 %s895, 7
          %s901 = sand.u32 %s895, 127
          %s902 = sadd.s32 %s889, %s901
          %s903 = sadd.s32 %s899, %s902
          %s904 = sld [smem:[#allocation4 + %s903]]
          %s905 = scalar_lea.vmem [#allocation2], %s904
          %v906 = vld [vmem:[%s905] sm:$0x1]
          %s907 = sadd.s32 %s877, 2
          %s908 = sshra.s32 %s907, 7
          %s909 = sand.u32 %s907, 127
          %s910 = sadd.s32 %s908, %s882
          %s911 = smul.u32 %s910, 512
          %s912 = sshra.s32 %s907, 7
          %s913 = sand.u32 %s907, 127
          %s914 = sadd.s32 %s889, %s913
          %s915 = sadd.s32 %s911, %s914
          %s916 = sld [smem:[#allocation4 + %s915]]
          %s917 = scalar_lea.vmem [#allocation2], %s916
          %v918 = vld [vmem:[%s917] sm:$0x1]
          %s919 = sadd.s32 %s877, 3
          %s920 = sshra.s32 %s919, 7
          %s921 = sand.u32 %s919, 127
          %s922 = sadd.s32 %s920, %s882
          %s923 = smul.u32 %s922, 512
          %s924 = sshra.s32 %s919, 7
          %s925 = sand.u32 %s919, 127
          %s926 = sadd.s32 %s889, %s925
          %s927 = sadd.s32 %s923, %s926
          %s928 = sld [smem:[#allocation4 + %s927]]
          %s929 = scalar_lea.vmem [#allocation2], %s928
          %v930 = vld [vmem:[%s929] sm:$0x1]
          %s931 = sadd.s32 %s877, 4
          %s932 = sshra.s32 %s931, 7
          %s933 = sand.u32 %s931, 127
          %s934 = sadd.s32 %s932, %s882
          %s935 = smul.u32 %s934, 512
          %s936 = sshra.s32 %s931, 7
          %s937 = sand.u32 %s931, 127
          %s938 = sadd.s32 %s889, %s937
          %s939 = sadd.s32 %s935, %s938
          %s940 = sld [smem:[#allocation4 + %s939]]
          %s941 = scalar_lea.vmem [#allocation2], %s940
          %v942 = vld [vmem:[%s941] sm:$0x1]
          %s943 = sadd.s32 %s877, 5
          %s944 = sshra.s32 %s943, 7
          %s945 = sand.u32 %s943, 127
          %s946 = sadd.s32 %s944, %s882
          %s947 = smul.u32 %s946, 512
          %s948 = sshra.s32 %s943, 7
          %s949 = sand.u32 %s943, 127
          %s950 = sadd.s32 %s889, %s949
          %s951 = sadd.s32 %s947, %s950
          %s952 = sld [smem:[#allocation4 + %s951]]
          %s953 = scalar_lea.vmem [#allocation2], %s952
          %v954 = vld [vmem:[%s953] sm:$0x1]
          %s955 = sadd.s32 %s877, 6
          %s956 = sshra.s32 %s955, 7
          %s957 = sand.u32 %s955, 127
          %s958 = sadd.s32 %s956, %s882
          %s959 = smul.u32 %s958, 512
          %s960 = sshra.s32 %s955, 7
          %s961 = sand.u32 %s955, 127
          %s962 = sadd.s32 %s889, %s961
          %s963 = sadd.s32 %s959, %s962
          %s964 = sld [smem:[#allocation4 + %s963]]
          %s965 = scalar_lea.vmem [#allocation2], %s964
          %v966 = vld [vmem:[%s965] sm:$0x1]
          %s967 = sadd.s32 %s877, 7
          %s968 = sshra.s32 %s967, 7
          %s969 = sand.u32 %s967, 127
          %s970 = sadd.s32 %s968, %s882
          %s971 = smul.u32 %s970, 512
          %s972 = sshra.s32 %s967, 7
          %s973 = sand.u32 %s967, 127
          %s974 = sadd.s32 %s889, %s973
          %s975 = sadd.s32 %s971, %s974
          %s976 = sld [smem:[#allocation4 + %s975]]
          %s977 = scalar_lea.vmem [#allocation2], %s976
          %v978 = vld [vmem:[%s977] sm:$0x1]
          %v980 = vrot.slane %v906, 7
          %v983 = vrot.slane %v918, 6
          %v986 = vrot.slane %v930, 5
          %v989 = vrot.slane %v942, 4
          %v992 = vrot.slane %v954, 3
          %v995 = vrot.slane %v966, 2
          %v998 = vrot.slane %v978, 1
          %vm1000 = vcmask 1040384
          %v1001 = vsel %vm1000, %v894, %v980
          %vm1002 = vcmask 1041408
          %v1003 = vsel %vm1002, %v1001, %v983
          %vm1004 = vcmask 1042432
          %v1005 = vsel %vm1004, %v1003, %v986
          %vm1006 = vcmask 1043456
          %v1007 = vsel %vm1006, %v1005, %v989
          %vm1008 = vcmask 1044480
          %v1009 = vsel %vm1008, %v1007, %v992
          %vm1010 = vcmask 1045504
          %v1011 = vsel %vm1010, %v1009, %v995
          %vm1012 = vcmask 1046528
          %v1013 = vsel %vm1012, %v1011, %v998
          %s1014 = scalar_lea.vmem [#allocation3], %s877
          %1015 = vst [vmem:[%s1014] sm:$0xff] %v1013
        $region59: #{tpu_custom_call.1} parent=27 // loop_footer
          %s876 = sadd.s32 1, %s872
        $region60: #{tpu_custom_call.1} parent=27 // loop_footer_branch
          %871 = sbr.rel target = $region56
        $region61: #{tpu_custom_call.1} parent=27 // loop_exit
          _
        %v1016 = vld [vmem:[#allocation3] sm:$0xff]
        %v1017 = vld [vmem:[#allocation3 + $0x8] sm:$0xff]
        %v1018 = vld [vmem:[#allocation3 + $0x10] sm:$0xff]
        %v1019 = vld [vmem:[#allocation3 + $0x18] sm:$0xff]
        %v1020 = vld [vmem:[#allocation3 + $0x20] sm:$0xff]
        %v1021 = vld [vmem:[#allocation3 + $0x28] sm:$0xff]
        %v1022 = vld [vmem:[#allocation3 + $0x30] sm:$0xff]
        %v1023 = vld [vmem:[#allocation3 + $0x38] sm:$0xff]
        %v1024 = vld [vmem:[#allocation3 + $0x40] sm:$0xff]
        %v1025 = vld [vmem:[#allocation3 + $0x48] sm:$0xff]
        %v1026 = vld [vmem:[#allocation3 + $0x50] sm:$0xff]
        %v1027 = vld [vmem:[#allocation3 + $0x58] sm:$0xff]
        %v1028 = vld [vmem:[#allocation3 + $0x60] sm:$0xff]
        %v1029 = vld [vmem:[#allocation3 + $0x68] sm:$0xff]
        %v1030 = vld [vmem:[#allocation3 + $0x70] sm:$0xff]
        %v1031 = vld [vmem:[#allocation3 + $0x78] sm:$0xff]
        %v1032 = vld [vmem:[#allocation3 + $0x80] sm:$0xff]
        %v1033 = vld [vmem:[#allocation3 + $0x88] sm:$0xff]
        %v1034 = vld [vmem:[#allocation3 + $0x90] sm:$0xff]
        %v1035 = vld [vmem:[#allocation3 + $0x98] sm:$0xff]
        %v1036 = vld [vmem:[#allocation3 + $0xa0] sm:$0xff]
        %v1037 = vld [vmem:[#allocation3 + $0xa8] sm:$0xff]
        %v1038 = vld [vmem:[#allocation3 + $0xb0] sm:$0xff]
        %v1039 = vld [vmem:[#allocation3 + $0xb8] sm:$0xff]
        %v1040 = vld [vmem:[#allocation3 + $0xc0] sm:$0xff]
        %v1041 = vld [vmem:[#allocation3 + $0xc8] sm:$0xff]
        %v1042 = vld [vmem:[#allocation3 + $0xd0] sm:$0xff]
        %v1043 = vld [vmem:[#allocation3 + $0xd8] sm:$0xff]
        %v1044 = vld [vmem:[#allocation3 + $0xe0] sm:$0xff]
        %v1045 = vld [vmem:[#allocation3 + $0xe8] sm:$0xff]
        %v1046 = vld [vmem:[#allocation3 + $0xf0] sm:$0xff]
        %v1047 = vld [vmem:[#allocation3 + $0xf8] sm:$0xff]
        %1048 = vxpose.xlu0.b32.start [1/16] %v1016, 128
        %1049 = vxpose.xlu0.b32.cont [2/16] %v1017, 128
        %1050 = vxpose.xlu0.b32.cont [3/16] %v1018, 128
        %1051 = vxpose.xlu0.b32.cont [4/16] %v1019, 128
        %1052 = vxpose.xlu0.b32.cont [5/16] %v1020, 128
        %1053 = vxpose.xlu0.b32.cont [6/16] %v1021, 128
        %1054 = vxpose.xlu0.b32.cont [7/16] %v1022, 128
        %1055 = vxpose.xlu0.b32.cont [8/16] %v1023, 128
        %1056 = vxpose.xlu0.b32.cont [9/16] %v1024, 128
        %1057 = vxpose.xlu0.b32.cont [10/16] %v1025, 128
        %1058 = vxpose.xlu0.b32.cont [11/16] %v1026, 128
        %1059 = vxpose.xlu0.b32.cont [12/16] %v1027, 128
        %1060 = vxpose.xlu0.b32.cont [13/16] %v1028, 128
        %1061 = vxpose.xlu0.b32.cont [14/16] %v1029, 128
        %1062 = vxpose.xlu0.b32.cont [15/16] %v1030, 128
        %1063 = vxpose.xlu0.b32.end [16/16] %v1031, 128
        %v1064 = vpop.trf.xlu0
        %v1065 = vpop.trf.xlu0
        %v1066 = vpop.trf.xlu0
        %v1067 = vpop.trf.xlu0
        %v1068 = vpop.trf.xlu0
        %v1069 = vpop.trf.xlu0
        %v1070 = vpop.trf.xlu0
        %v1071 = vpop.trf.xlu0
        %v1072 = vpop.trf.xlu0
        %v1073 = vpop.trf.xlu0
        %v1074 = vpop.trf.xlu0
        %v1075 = vpop.trf.xlu0
        %v1076 = vpop.trf.xlu0
        %v1077 = vpop.trf.xlu0
        %v1078 = vpop.trf.xlu0
        %v1079 = vpop.trf.xlu0
        %1080 = vxpose.xlu0.b32.start [1/16] %v1032, 128
        %1081 = vxpose.xlu0.b32.cont [2/16] %v1033, 128
        %1082 = vxpose.xlu0.b32.cont [3/16] %v1034, 128
        %1083 = vxpose.xlu0.b32.cont [4/16] %v1035, 128
        %1084 = vxpose.xlu0.b32.cont [5/16] %v1036, 128
        %1085 = vxpose.xlu0.b32.cont [6/16] %v1037, 128
        %1086 = vxpose.xlu0.b32.cont [7/16] %v1038, 128
        %1087 = vxpose.xlu0.b32.cont [8/16] %v1039, 128
        %1088 = vxpose.xlu0.b32.cont [9/16] %v1040, 128
        %1089 = vxpose.xlu0.b32.cont [10/16] %v1041, 128
        %1090 = vxpose.xlu0.b32.cont [11/16] %v1042, 128
        %1091 = vxpose.xlu0.b32.cont [12/16] %v1043, 128
        %1092 = vxpose.xlu0.b32.cont [13/16] %v1044, 128
        %1093 = vxpose.xlu0.b32.cont [14/16] %v1045, 128
        %1094 = vxpose.xlu0.b32.cont [15/16] %v1046, 128
        %1095 = vxpose.xlu0.b32.end [16/16] %v1047, 128
        %v1096 = vpop.trf.xlu0
        %v1097 = vpop.trf.xlu0
        %v1098 = vpop.trf.xlu0
        %v1099 = vpop.trf.xlu0
        %v1100 = vpop.trf.xlu0
        %v1101 = vpop.trf.xlu0
        %v1102 = vpop.trf.xlu0
        %v1103 = vpop.trf.xlu0
        %v1104 = vpop.trf.xlu0
        %v1105 = vpop.trf.xlu0
        %v1106 = vpop.trf.xlu0
        %v1107 = vpop.trf.xlu0
        %v1108 = vpop.trf.xlu0
        %v1109 = vpop.trf.xlu0
        %v1110 = vpop.trf.xlu0
        %v1111 = vpop.trf.xlu0
        %s1112 = scalar_lea.vmem %s187, 512 [#allocation9]
        %1113 = vst [vmem:[%s1112] sm:$0xff] %v1064
        %1114 = vst [vmem:[%s1112 + $0x8] sm:$0xff] %v1096
        %1115 = vst [vmem:[%s1112 + $0x10] sm:$0xff] %v1065
        %1116 = vst [vmem:[%s1112 + $0x18] sm:$0xff] %v1097
        %1117 = vst [vmem:[%s1112 + $0x20] sm:$0xff] %v1066
        %1118 = vst [vmem:[%s1112 + $0x28] sm:$0xff] %v1098
        %1119 = vst [vmem:[%s1112 + $0x30] sm:$0xff] %v1067
        %1120 = vst [vmem:[%s1112 + $0x38] sm:$0xff] %v1099
        %1121 = vst [vmem:[%s1112 + $0x40] sm:$0xff] %v1068
        %1122 = vst [vmem:[%s1112 + $0x48] sm:$0xff] %v1100
        %1123 = vst [vmem:[%s1112 + $0x50] sm:$0xff] %v1069
        %1124 = vst [vmem:[%s1112 + $0x58] sm:$0xff] %v1101
        %1125 = vst [vmem:[%s1112 + $0x60] sm:$0xff] %v1070
        %1126 = vst [vmem:[%s1112 + $0x68] sm:$0xff] %v1102
        %1127 = vst [vmem:[%s1112 + $0x70] sm:$0xff] %v1071
        %1128 = vst [vmem:[%s1112 + $0x78] sm:$0xff] %v1103
        %1129 = vst [vmem:[%s1112 + $0x80] sm:$0xff] %v1072
        %1130 = vst [vmem:[%s1112 + $0x88] sm:$0xff] %v1104
        %1131 = vst [vmem:[%s1112 + $0x90] sm:$0xff] %v1073
        %1132 = vst [vmem:[%s1112 + $0x98] sm:$0xff] %v1105
        %1133 = vst [vmem:[%s1112 + $0xa0] sm:$0xff] %v1074
        %1134 = vst [vmem:[%s1112 + $0xa8] sm:$0xff] %v1106
        %1135 = vst [vmem:[%s1112 + $0xb0] sm:$0xff] %v1075
        %1136 = vst [vmem:[%s1112 + $0xb8] sm:$0xff] %v1107
        %1137 = vst [vmem:[%s1112 + $0xc0] sm:$0xff] %v1076
        %1138 = vst [vmem:[%s1112 + $0xc8] sm:$0xff] %v1108
        %1139 = vst [vmem:[%s1112 + $0xd0] sm:$0xff] %v1077
        %1140 = vst [vmem:[%s1112 + $0xd8] sm:$0xff] %v1109
        %1141 = vst [vmem:[%s1112 + $0xe0] sm:$0xff] %v1078
        %1142 = vst [vmem:[%s1112 + $0xe8] sm:$0xff] %v1110
        %1143 = vst [vmem:[%s1112 + $0xf0] sm:$0xff] %v1079
        %1144 = vst [vmem:[%s1112 + $0xf8] sm:$0xff] %v1111
        %s1145 = sadd.s32 %s321, 3
        loop: start=0, step=1, limit=32
        $region62: #{tpu_custom_call.1} parent=27 // loop_pre_header
          _
        $region63: #{tpu_custom_call.1} parent=27 // loop_header
          %s1147 = sphi 0, %s1151
          %p1148 = scmp.ge.s32.totalorder %s1147, 32
        $region64: #{tpu_custom_call.1} parent=27 // loop_header_branch
          %1150 = sbr.rel (%p1148) target = $region68
        $region65: #{tpu_custom_call.1} parent=27 // loop_body
          %s1152 = smul.u32 %s1147, 8
          %s1153 = sshra.s32 %s1152, 7
          %s1154 = sand.u32 %s1152, 127
          %s1155 = sshra.s32 %s1145, 2
          %s1156 = sand.u32 %s1145, 3
          %s1157 = smul.u32 %s1155, 2
          %s1158 = sadd.s32 %s1153, %s1157
          %s1159 = smul.u32 %s1158, 512
          %s1160 = sshra.s32 %s1145, 2
          %s1161 = sand.u32 %s1145, 3
          %s1162 = sshra.s32 %s1152, 7
          %s1163 = sand.u32 %s1152, 127
          %s1164 = smul.u32 %s1161, 128
          %s1165 = sadd.s32 %s1164, %s1163
          %s1166 = sadd.s32 %s1159, %s1165
          %s1167 = sld [smem:[#allocation4 + %s1166]]
          %s1168 = scalar_lea.vmem [#allocation2], %s1167
          %v1169 = vld [vmem:[%s1168] sm:$0x1]
          %s1170 = sadd.s32 %s1152, 1
          %s1171 = sshra.s32 %s1170, 7
          %s1172 = sand.u32 %s1170, 127
          %s1173 = sadd.s32 %s1171, %s1157
          %s1174 = smul.u32 %s1173, 512
          %s1175 = sshra.s32 %s1170, 7
          %s1176 = sand.u32 %s1170, 127
          %s1177 = sadd.s32 %s1164, %s1176
          %s1178 = sadd.s32 %s1174, %s1177
          %s1179 = sld [smem:[#allocation4 + %s1178]]
          %s1180 = scalar_lea.vmem [#allocation2], %s1179
          %v1181 = vld [vmem:[%s1180] sm:$0x1]
          %s1182 = sadd.s32 %s1152, 2
          %s1183 = sshra.s32 %s1182, 7
          %s1184 = sand.u32 %s1182, 127
          %s1185 = sadd.s32 %s1183, %s1157
          %s1186 = smul.u32 %s1185, 512
          %s1187 = sshra.s32 %s1182, 7
          %s1188 = sand.u32 %s1182, 127
          %s1189 = sadd.s32 %s1164, %s1188
          %s1190 = sadd.s32 %s1186, %s1189
          %s1191 = sld [smem:[#allocation4 + %s1190]]
          %s1192 = scalar_lea.vmem [#allocation2], %s1191
          %v1193 = vld [vmem:[%s1192] sm:$0x1]
          %s1194 = sadd.s32 %s1152, 3
          %s1195 = sshra.s32 %s1194, 7
          %s1196 = sand.u32 %s1194, 127
          %s1197 = sadd.s32 %s1195, %s1157
          %s1198 = smul.u32 %s1197, 512
          %s1199 = sshra.s32 %s1194, 7
          %s1200 = sand.u32 %s1194, 127
          %s1201 = sadd.s32 %s1164, %s1200
          %s1202 = sadd.s32 %s1198, %s1201
          %s1203 = sld [smem:[#allocation4 + %s1202]]
          %s1204 = scalar_lea.vmem [#allocation2], %s1203
          %v1205 = vld [vmem:[%s1204] sm:$0x1]
          %s1206 = sadd.s32 %s1152, 4
          %s1207 = sshra.s32 %s1206, 7
          %s1208 = sand.u32 %s1206, 127
          %s1209 = sadd.s32 %s1207, %s1157
          %s1210 = smul.u32 %s1209, 512
          %s1211 = sshra.s32 %s1206, 7
          %s1212 = sand.u32 %s1206, 127
          %s1213 = sadd.s32 %s1164, %s1212
          %s1214 = sadd.s32 %s1210, %s1213
          %s1215 = sld [smem:[#allocation4 + %s1214]]
          %s1216 = scalar_lea.vmem [#allocation2], %s1215
          %v1217 = vld [vmem:[%s1216] sm:$0x1]
          %s1218 = sadd.s32 %s1152, 5
          %s1219 = sshra.s32 %s1218, 7
          %s1220 = sand.u32 %s1218, 127
          %s1221 = sadd.s32 %s1219, %s1157
          %s1222 = smul.u32 %s1221, 512
          %s1223 = sshra.s32 %s1218, 7
          %s1224 = sand.u32 %s1218, 127
          %s1225 = sadd.s32 %s1164, %s1224
          %s1226 = sadd.s32 %s1222, %s1225
          %s1227 = sld [smem:[#allocation4 + %s1226]]
          %s1228 = scalar_lea.vmem [#allocation2], %s1227
          %v1229 = vld [vmem:[%s1228] sm:$0x1]
          %s1230 = sadd.s32 %s1152, 6
          %s1231 = sshra.s32 %s1230, 7
          %s1232 = sand.u32 %s1230, 127
          %s1233 = sadd.s32 %s1231, %s1157
          %s1234 = smul.u32 %s1233, 512
          %s1235 = sshra.s32 %s1230, 7
          %s1236 = sand.u32 %s1230, 127
          %s1237 = sadd.s32 %s1164, %s1236
          %s1238 = sadd.s32 %s1234, %s1237
          %s1239 = sld [smem:[#allocation4 + %s1238]]
          %s1240 = scalar_lea.vmem [#allocation2], %s1239
          %v1241 = vld [vmem:[%s1240] sm:$0x1]
          %s1242 = sadd.s32 %s1152, 7
          %s1243 = sshra.s32 %s1242, 7
          %s1244 = sand.u32 %s1242, 127
          %s1245 = sadd.s32 %s1243, %s1157
          %s1246 = smul.u32 %s1245, 512
          %s1247 = sshra.s32 %s1242, 7
          %s1248 = sand.u32 %s1242, 127
          %s1249 = sadd.s32 %s1164, %s1248
          %s1250 = sadd.s32 %s1246, %s1249
          %s1251 = sld [smem:[#allocation4 + %s1250]]
          %s1252 = scalar_lea.vmem [#allocation2], %s1251
          %v1253 = vld [vmem:[%s1252] sm:$0x1]
          %v1255 = vrot.slane %v1181, 7
          %v1258 = vrot.slane %v1193, 6
          %v1261 = vrot.slane %v1205, 5
          %v1264 = vrot.slane %v1217, 4
          %v1267 = vrot.slane %v1229, 3
          %v1270 = vrot.slane %v1241, 2
          %v1273 = vrot.slane %v1253, 1
          %vm1275 = vcmask 1040384
          %v1276 = vsel %vm1275, %v1169, %v1255
          %vm1277 = vcmask 1041408
          %v1278 = vsel %vm1277, %v1276, %v1258
          %vm1279 = vcmask 1042432
          %v1280 = vsel %vm1279, %v1278, %v1261
          %vm1281 = vcmask 1043456
          %v1282 = vsel %vm1281, %v1280, %v1264
          %vm1283 = vcmask 1044480
          %v1284 = vsel %vm1283, %v1282, %v1267
          %vm1285 = vcmask 1045504
          %v1286 = vsel %vm1285, %v1284, %v1270
          %vm1287 = vcmask 1046528
          %v1288 = vsel %vm1287, %v1286, %v1273
          %s1289 = scalar_lea.vmem [#allocation3], %s1152
          %1290 = vst [vmem:[%s1289] sm:$0xff] %v1288
        $region66: #{tpu_custom_call.1} parent=27 // loop_footer
          %s1151 = sadd.s32 1, %s1147
        $region67: #{tpu_custom_call.1} parent=27 // loop_footer_branch
          %1146 = sbr.rel target = $region63
        $region68: #{tpu_custom_call.1} parent=27 // loop_exit
          _
        %v1291 = vld [vmem:[#allocation3] sm:$0xff]
        %v1292 = vld [vmem:[#allocation3 + $0x8] sm:$0xff]
        %v1293 = vld [vmem:[#allocation3 + $0x10] sm:$0xff]
        %v1294 = vld [vmem:[#allocation3 + $0x18] sm:$0xff]
        %v1295 = vld [vmem:[#allocation3 + $0x20] sm:$0xff]
        %v1296 = vld [vmem:[#allocation3 + $0x28] sm:$0xff]
        %v1297 = vld [vmem:[#allocation3 + $0x30] sm:$0xff]
        %v1298 = vld [vmem:[#allocation3 + $0x38] sm:$0xff]
        %v1299 = vld [vmem:[#allocation3 + $0x40] sm:$0xff]
        %v1300 = vld [vmem:[#allocation3 + $0x48] sm:$0xff]
        %v1301 = vld [vmem:[#allocation3 + $0x50] sm:$0xff]
        %v1302 = vld [vmem:[#allocation3 + $0x58] sm:$0xff]
        %v1303 = vld [vmem:[#allocation3 + $0x60] sm:$0xff]
        %v1304 = vld [vmem:[#allocation3 + $0x68] sm:$0xff]
        %v1305 = vld [vmem:[#allocation3 + $0x70] sm:$0xff]
        %v1306 = vld [vmem:[#allocation3 + $0x78] sm:$0xff]
        %v1307 = vld [vmem:[#allocation3 + $0x80] sm:$0xff]
        %v1308 = vld [vmem:[#allocation3 + $0x88] sm:$0xff]
        %v1309 = vld [vmem:[#allocation3 + $0x90] sm:$0xff]
        %v1310 = vld [vmem:[#allocation3 + $0x98] sm:$0xff]
        %v1311 = vld [vmem:[#allocation3 + $0xa0] sm:$0xff]
        %v1312 = vld [vmem:[#allocation3 + $0xa8] sm:$0xff]
        %v1313 = vld [vmem:[#allocation3 + $0xb0] sm:$0xff]
        %v1314 = vld [vmem:[#allocation3 + $0xb8] sm:$0xff]
        %v1315 = vld [vmem:[#allocation3 + $0xc0] sm:$0xff]
        %v1316 = vld [vmem:[#allocation3 + $0xc8] sm:$0xff]
        %v1317 = vld [vmem:[#allocation3 + $0xd0] sm:$0xff]
        %v1318 = vld [vmem:[#allocation3 + $0xd8] sm:$0xff]
        %v1319 = vld [vmem:[#allocation3 + $0xe0] sm:$0xff]
        %v1320 = vld [vmem:[#allocation3 + $0xe8] sm:$0xff]
        %v1321 = vld [vmem:[#allocation3 + $0xf0] sm:$0xff]
        %v1322 = vld [vmem:[#allocation3 + $0xf8] sm:$0xff]
        %1323 = vxpose.xlu0.b32.start [1/16] %v1291, 128
        %1324 = vxpose.xlu0.b32.cont [2/16] %v1292, 128
        %1325 = vxpose.xlu0.b32.cont [3/16] %v1293, 128
        %1326 = vxpose.xlu0.b32.cont [4/16] %v1294, 128
        %1327 = vxpose.xlu0.b32.cont [5/16] %v1295, 128
        %1328 = vxpose.xlu0.b32.cont [6/16] %v1296, 128
        %1329 = vxpose.xlu0.b32.cont [7/16] %v1297, 128
        %1330 = vxpose.xlu0.b32.cont [8/16] %v1298, 128
        %1331 = vxpose.xlu0.b32.cont [9/16] %v1299, 128
        %1332 = vxpose.xlu0.b32.cont [10/16] %v1300, 128
        %1333 = vxpose.xlu0.b32.cont [11/16] %v1301, 128
        %1334 = vxpose.xlu0.b32.cont [12/16] %v1302, 128
        %1335 = vxpose.xlu0.b32.cont [13/16] %v1303, 128
        %1336 = vxpose.xlu0.b32.cont [14/16] %v1304, 128
        %1337 = vxpose.xlu0.b32.cont [15/16] %v1305, 128
        %1338 = vxpose.xlu0.b32.end [16/16] %v1306, 128
        %v1339 = vpop.trf.xlu0
        %v1340 = vpop.trf.xlu0
        %v1341 = vpop.trf.xlu0
        %v1342 = vpop.trf.xlu0
        %v1343 = vpop.trf.xlu0
        %v1344 = vpop.trf.xlu0
        %v1345 = vpop.trf.xlu0
        %v1346 = vpop.trf.xlu0
        %v1347 = vpop.trf.xlu0
        %v1348 = vpop.trf.xlu0
        %v1349 = vpop.trf.xlu0
        %v1350 = vpop.trf.xlu0
        %v1351 = vpop.trf.xlu0
        %v1352 = vpop.trf.xlu0
        %v1353 = vpop.trf.xlu0
        %v1354 = vpop.trf.xlu0
        %1355 = vxpose.xlu0.b32.start [1/16] %v1307, 128
        %1356 = vxpose.xlu0.b32.cont [2/16] %v1308, 128
        %1357 = vxpose.xlu0.b32.cont [3/16] %v1309, 128
        %1358 = vxpose.xlu0.b32.cont [4/16] %v1310, 128
        %1359 = vxpose.xlu0.b32.cont [5/16] %v1311, 128
        %1360 = vxpose.xlu0.b32.cont [6/16] %v1312, 128
        %1361 = vxpose.xlu0.b32.cont [7/16] %v1313, 128
        %1362 = vxpose.xlu0.b32.cont [8/16] %v1314, 128
        %1363 = vxpose.xlu0.b32.cont [9/16] %v1315, 128
        %1364 = vxpose.xlu0.b32.cont [10/16] %v1316, 128
        %1365 = vxpose.xlu0.b32.cont [11/16] %v1317, 128
        %1366 = vxpose.xlu0.b32.cont [12/16] %v1318, 128
        %1367 = vxpose.xlu0.b32.cont [13/16] %v1319, 128
        %1368 = vxpose.xlu0.b32.cont [14/16] %v1320, 128
        %1369 = vxpose.xlu0.b32.cont [15/16] %v1321, 128
        %1370 = vxpose.xlu0.b32.end [16/16] %v1322, 128
        %v1371 = vpop.trf.xlu0
        %v1372 = vpop.trf.xlu0
        %v1373 = vpop.trf.xlu0
        %v1374 = vpop.trf.xlu0
        %v1375 = vpop.trf.xlu0
        %v1376 = vpop.trf.xlu0
        %v1377 = vpop.trf.xlu0
        %v1378 = vpop.trf.xlu0
        %v1379 = vpop.trf.xlu0
        %v1380 = vpop.trf.xlu0
        %v1381 = vpop.trf.xlu0
        %v1382 = vpop.trf.xlu0
        %v1383 = vpop.trf.xlu0
        %v1384 = vpop.trf.xlu0
        %v1385 = vpop.trf.xlu0
        %v1386 = vpop.trf.xlu0
        %s1387 = scalar_lea.vmem %s187, 768 [#allocation9]
        %1388 = vst [vmem:[%s1387] sm:$0xff] %v1339
        %1389 = vst [vmem:[%s1387 + $0x8] sm:$0xff] %v1371
        %1390 = vst [vmem:[%s1387 + $0x10] sm:$0xff] %v1340
        %1391 = vst [vmem:[%s1387 + $0x18] sm:$0xff] %v1372
        %1392 = vst [vmem:[%s1387 + $0x20] sm:$0xff] %v1341
        %1393 = vst [vmem:[%s1387 + $0x28] sm:$0xff] %v1373
        %1394 = vst [vmem:[%s1387 + $0x30] sm:$0xff] %v1342
        %1395 = vst [vmem:[%s1387 + $0x38] sm:$0xff] %v1374
        %1396 = vst [vmem:[%s1387 + $0x40] sm:$0xff] %v1343
        %1397 = vst [vmem:[%s1387 + $0x48] sm:$0xff] %v1375
        %1398 = vst [vmem:[%s1387 + $0x50] sm:$0xff] %v1344
        %1399 = vst [vmem:[%s1387 + $0x58] sm:$0xff] %v1376
        %1400 = vst [vmem:[%s1387 + $0x60] sm:$0xff] %v1345
        %1401 = vst [vmem:[%s1387 + $0x68] sm:$0xff] %v1377
        %1402 = vst [vmem:[%s1387 + $0x70] sm:$0xff] %v1346
        %1403 = vst [vmem:[%s1387 + $0x78] sm:$0xff] %v1378
        %1404 = vst [vmem:[%s1387 + $0x80] sm:$0xff] %v1347
        %1405 = vst [vmem:[%s1387 + $0x88] sm:$0xff] %v1379
        %1406 = vst [vmem:[%s1387 + $0x90] sm:$0xff] %v1348
        %1407 = vst [vmem:[%s1387 + $0x98] sm:$0xff] %v1380
        %1408 = vst [vmem:[%s1387 + $0xa0] sm:$0xff] %v1349
        %1409 = vst [vmem:[%s1387 + $0xa8] sm:$0xff] %v1381
        %1410 = vst [vmem:[%s1387 + $0xb0] sm:$0xff] %v1350
        %1411 = vst [vmem:[%s1387 + $0xb8] sm:$0xff] %v1382
        %1412 = vst [vmem:[%s1387 + $0xc0] sm:$0xff] %v1351
        %1413 = vst [vmem:[%s1387 + $0xc8] sm:$0xff] %v1383
        %1414 = vst [vmem:[%s1387 + $0xd0] sm:$0xff] %v1352
        %1415 = vst [vmem:[%s1387 + $0xd8] sm:$0xff] %v1384
        %1416 = vst [vmem:[%s1387 + $0xe0] sm:$0xff] %v1353
        %1417 = vst [vmem:[%s1387 + $0xe8] sm:$0xff] %v1385
        %1418 = vst [vmem:[%s1387 + $0xf0] sm:$0xff] %v1354
        %1419 = vst [vmem:[%s1387 + $0xf8] sm:$0xff] %v1386
        %s1420 = sand.u32 %s89, 1
        %s1421 = scalar_lea.sflag [#allocation6], %s1420
        %s1422 = sand.u32 %s89, 1
        %s1423 = smul.addr %s1422, 1024
        %s1424 = scalar_lea.vmem [#allocation9], %s1423
        // Predicated region
        $region69: #{tpu_custom_call.1} parent=27 // pred_check
          %p1425 = pneg %p99
        $region70: #{tpu_custom_call.1} parent=27 // pred_check_branch
          %1427 = sbr.rel (%p1425) target = $region72
        $region71: #{tpu_custom_call.1} parent=27 // pred_region
          %s1428 = smul.u32 4, %s25
          %s1430 = ssub.s32 16384, 16384
          %1431 = vsyncadd %s1421, %s1430
          %s1432 = smul.addr %s1428, 32
          %s1433 = smul.addr %s24, 128
          %s1434 = sadd.s32 %s1432, %s1433
          %s1435 = smul.addr %s1434, 128
          %s1436 = scalar_lea.hbm %s2, %s1435
          %s1437 = sshll.u32 %s1424, 4
          %s1438 = int_to_ptr.vmem [resolvable:$true] %s1437
          %1443 = dma.vmem_to_hbm [thread:$0]  %s1438, 16384, %s1436, %s1421, 256, 256, 16
        $region72: #{tpu_custom_call.1} parent=27 // pred_fallthru
          _
      $region28: #{tpu_custom_call.1} parent=5 // pred_fallthru
        _
      %p1444 = scmp.le.s32.totalorder 2, %s15
      // Predicated region
      $region73: #{tpu_custom_call.1} parent=5 // pred_check
        %p1445 = pneg %p1444
      $region74: #{tpu_custom_call.1} parent=5 // pred_check_branch
        %1447 = sbr.rel (%p1445) target = $region76
      $region75: #{tpu_custom_call.1} parent=5 // pred_region
        %s1448 = ssub.s32 %s15, 2
        // Predicated region
        $region77: #{tpu_custom_call.1} parent=75 // pred_check
          %p1449 = pneg %p105
        $region78: #{tpu_custom_call.1} parent=75 // pred_check_branch
          %1451 = sbr.rel (%p1449) target = $region80
        $region79: #{tpu_custom_call.1} parent=75 // pred_region
          %s1452 = sand.u32 %s90, 1
          %s1453 = scalar_lea.sflag [#allocation6], %s1452
          %s1454 = sand.u32 %s90, 1
          %s1455 = smul.addr %s1454, 1024
          %s1456 = scalar_lea.vmem [#allocation9], %s1455
          %1457 = dma.done %s1453, 16384
        $region80: #{tpu_custom_call.1} parent=75 // pred_fallthru
          _
      $region76: #{tpu_custom_call.1} parent=5 // pred_fallthru
        _
    $region6: #{tpu_custom_call.1} parent=1 // loop_footer
      %s19 = sadd.s32 1, %s15
    $region7: #{tpu_custom_call.1} parent=1 // loop_footer_branch
      %14 = sbr.rel target = $region3
    $region8: #{tpu_custom_call.1} parent=1 // loop_exit
      _
    %1458 = vsyncpa [#allocation5], 1
    %s1459 = scalar_lea.sflag [#allocation5], 1
    %1460 = vsyncpa %s1459, 1
    %1461 = vsyncpa [#allocation6], 1
    %s1462 = scalar_lea.sflag [#allocation6], 1
    %1463 = vsyncpa %s1462, 1
    %1464 = vsyncpa [#allocation7], 1
    %s1465 = scalar_lea.sflag [#allocation7], 1
    %1466 = vsyncpa %s1465, 1

</llo_original>
